<compile_context>
chip_gen: v5e
topology: v5e:2x2
jax: 0.10.0
libtpu: 0.0.40
codegen_flags: <defaults>
</compile_context>

<pallas_src>
import numpy as np
import jax
import jax.numpy as jnp
from jax.experimental import pallas as pl
from jax.experimental.pallas import tpu as pltpu


# ----------------------------------------------------------------------------
# Mask construction (same math as the PyTorch reference, deterministic rng)
# ----------------------------------------------------------------------------
def sample_mask_indices(D, H, rng):
    mk = np.linspace(0, D - 1, H)
    ints = np.array(mk, dtype=int)
    ints += rng.rand() < mk - ints
    return ints


def create_mask(D_observed, D_latent, H, num_layers, rng):
    m_input = np.concatenate((np.zeros(D_observed), 1 + np.arange(D_latent)))
    m_w = [sample_mask_indices(D_latent, H, rng) for _ in range(num_layers)]
    m_v = np.arange(D_latent)
    M_A = 1.0 * (np.atleast_2d(m_v).T >= np.atleast_2d(m_input))
    M_W = [1.0 * (np.atleast_2d(m_w[0]).T >= np.atleast_2d(m_input))]
    for i in range(1, num_layers):
        M_W.append(1.0 * (np.atleast_2d(m_w[i]).T >= np.atleast_2d(m_w[i - 1])))
    M_V = 1.0 * (np.atleast_2d(m_v).T >= np.atleast_2d(m_w[-1]))
    return M_W, M_V, M_A


# ----------------------------------------------------------------------------
# Helpers
# ----------------------------------------------------------------------------
def _round_up(n, m=128):
    return ((n + m - 1) // m) * m


def _pad2d(a, rows, cols):
    return jnp.pad(a, ((0, rows - a.shape[0]), (0, cols - a.shape[1])))


# ----------------------------------------------------------------------------
# Parameter init (matches the PyTorch __init__ distributions:
# 1-D params ~ N(0, 0.01), 2-D params ~ U(-0.01, 0.01)), plus the
# pre-folded / pre-transposed / 128-padded / bf16 kernel-side parameters.
# ----------------------------------------------------------------------------
def init_params(key, D_observed, D_latent, H, num_layers):
    D_in = D_observed + D_latent
    D_out = D_latent
    rng = np.random.RandomState(0)
    M_W, M_V, M_A = create_mask(D_observed, D_latent, H, num_layers, rng)

    keys = jax.random.split(key, 4 * num_layers + 8)
    ki = iter(range(len(keys)))

    def uni(k, shape):
        return jax.random.uniform(k, shape, jnp.float32, -0.01, 0.01)

    def nrm(k, shape):
        return 0.01 * jax.random.normal(k, shape, jnp.float32)

    # Raw params in PyTorch layout [out_features, in_features] (kept for the ref).
    raw_layers = []
    in_feats = D_in
    for i in range(num_layers):
        w = uni(keys[next(ki)], (H, in_feats))
        b = nrm(keys[next(ki)], (H,))
        m = jnp.asarray(M_W[i], jnp.float32)
        raw_layers.append((w, m, b))
        in_feats = H

    wp = uni(keys[next(ki)], (D_out, H))
    bp = nrm(keys[next(ki)], (D_out,))
    wq = uni(keys[next(ki)], (D_out, H))
    bq = nrm(keys[next(ki)], (D_out,))
    wsp = uni(keys[next(ki)], (D_out, D_in))
    wsq = uni(keys[next(ki)], (D_out, D_in))
    mv = jnp.asarray(M_V, jnp.float32)
    ma = jnp.asarray(M_A, jnp.float32)

    # ---- Kernel-side folded / padded / bf16 parameters ----
    D_in_pad = _round_up(D_in)
    H_pad = _round_up(H)
    D_out_pad = _round_up(D_out)

    folded_layers = []
    in_pad = D_in_pad
    for (w, m, b) in raw_layers:
        wf = _pad2d((w * m).T, in_pad, H_pad).astype(jnp.bfloat16)     # [in_pad, H_pad]
        bf = _pad2d(b.reshape(1, -1), 1, H_pad).astype(jnp.bfloat16)   # [1, H_pad]
        folded_layers.append((wf, bf))
        in_pad = H_pad

    # Head fusion: p = sigmoid(logp - logq) (the +eps cancels), so only the
    # *difference* weights/biases are needed, stacked so the hidden-path and
    # skip-path matmuls collapse into ONE dot over concat([h, x]).
    wdh = _pad2d(((wp - wq) * mv).T, H_pad, D_out_pad)                 # [H_pad, D_out_pad]
    wdx = _pad2d(((wsp - wsq) * ma).T, D_in_pad, D_out_pad)            # [D_in_pad, D_out_pad]
    wd = jnp.concatenate([wdh, wdx], axis=0).astype(jnp.bfloat16)      # [H_pad+D_in_pad, D_out_pad]
    bd = _pad2d((bp - bq).reshape(1, -1), 1, D_out_pad).astype(jnp.bfloat16)

    return dict(
        folded_layers=folded_layers, wd=wd, bd=bd,
        raw=dict(layers=raw_layers, wp=wp, bp=bp, wq=wq, bq=bq,
                 wsp=wsp, wsq=wsq, mv=mv, ma=ma),
        D_in=D_in, D_out=D_out, H=H, num_layers=num_layers,
        D_in_pad=D_in_pad, H_pad=H_pad, D_out_pad=D_out_pad)


# ----------------------------------------------------------------------------
# Pallas kernel: whole forward pass for one batch tile, weights resident
# ----------------------------------------------------------------------------
def _made_kernel_factory(num_layers):
    def kernel(*refs):
        x_ref = refs[0]
        layer_refs = refs[1:1 + 2 * num_layers]
        wd_ref, bd_ref, out_ref = refs[1 + 2 * num_layers:]

        x = x_ref[...]                                    # bf16 [tb, D_in_pad]
        h = x
        for li in range(num_layers):
            w_ref = layer_refs[2 * li]
            b_ref = layer_refs[2 * li + 1]
            a = jnp.dot(h, w_ref[...], preferred_element_type=jnp.float32)
            a = a + b_ref[...].astype(jnp.float32)
            h = jnp.maximum(a, 0.0).astype(jnp.bfloat16)  # ReLU, back to bf16 for MXU

        # Single fused head dot over [h | x]; d = logp - logq (eps cancels).
        hx = jnp.concatenate([h, x], axis=-1)             # bf16 [tb, H_pad + D_in_pad]
        d = (jnp.dot(hx, wd_ref[...], preferred_element_type=jnp.float32)
             + bd_ref[...].astype(jnp.float32))
        # sigmoid(d) with exp (EUP) + approx reciprocal (EUP) — no VALU divide.
        out_ref[...] = pl.reciprocal(1.0 + jnp.exp(-d), approx=True)

    return kernel


def _pick_batch_tile(B, d_in_pad, d_out_pad, resident_bytes, stream_budget):
    # Streamed bytes per batch row, double-buffered: bf16 x in + f32 out.
    per_row = 2 * (d_in_pad * 2 + d_out_pad * 4)
    tile = 128
    for t in (2048, 1024, 512, 256, 128):
        if resident_bytes + t * per_row <= stream_budget:
            tile = t
            break
    # Prefer >= 2 grid steps so megacore chips (v7x) can split the batch.
    while tile > 128 and -(-B // tile) < 2:
        tile //= 2
    return tile


def made_forward(params, x):
    num_layers = params["num_layers"]
    B, D_in = x.shape
    D_out = params["D_out"]
    D_in_pad = params["D_in_pad"]
    D_out_pad = params["D_out_pad"]

    folded_layers = params["folded_layers"]
    wd, bd = params["wd"], params["bd"]

    # Resident-weight footprint (single-buffered bf16).
    resident_bytes = sum(int(w.size) * 2 + int(b.size) * 2 for (w, b) in folded_layers)
    resident_bytes += int(wd.size) * 2 + int(bd.size) * 2

    # VMEM budget: derive from the chip (64 MiB v7x, 128 MiB v5e/v6e).
    try:
        vmem_cap = int(pltpu.get_tpu_info().vmem_capacity_bytes)
    except Exception:
        vmem_cap = 64 * 1024 * 1024
    vmem_limit = min(vmem_cap * 3 // 4, 100 * 1024 * 1024)

    tile_b = _pick_batch_tile(B, D_in_pad, D_out_pad, resident_bytes,
                              int(vmem_limit * 0.8))
    B_pad = -(-B // tile_b) * tile_b
    grid = (B_pad // tile_b,)

    # Pad batch and feature dims; binary inputs are exact in bf16.
    x_p = jnp.pad(x, ((0, B_pad - B), (0, D_in_pad - D_in))).astype(jnp.bfloat16)

    inputs = [x_p]
    for (w, b) in folded_layers:
        inputs += [w, b]
    inputs += [wd, bd]

    def _build(use_buffered):
        def resident_spec(arr):
            # Full-array block, constant index_map -> stays resident in VMEM
            # across the whole batch grid.
            if use_buffered:
                return pl.BlockSpec(arr.shape, lambda i: (0, 0),
                                    pipeline_mode=pl.Buffered(1))
            return pl.BlockSpec(arr.shape, lambda i: (0, 0))

        in_specs = [pl.BlockSpec((tile_b, D_in_pad), lambda i: (i, 0))]
        for (w, b) in folded_layers:
            in_specs.append(resident_spec(w))
            in_specs.append(resident_spec(b))
        in_specs.append(resident_spec(wd))
        in_specs.append(resident_spec(bd))

        return pl.pallas_call(
            _made_kernel_factory(num_layers),
            out_shape=jax.ShapeDtypeStruct((B_pad, D_out_pad), jnp.float32),
            grid=grid,
            in_specs=in_specs,
            out_specs=pl.BlockSpec((tile_b, D_out_pad), lambda i: (i, 0)),
            compiler_params=pltpu.CompilerParams(
                dimension_semantics=("parallel",),
                vmem_limit_bytes=int(vmem_limit)),
        )

    try:
        out_p = _build(True)(*inputs)
    except Exception:
        # Fallback: default (double-buffered) residents if Buffered(1) is
        # rejected by this jax/mosaic version.
        out_p = _build(False)(*inputs)

    return out_p[:B, :D_out]


# ----------------------------------------------------------------------------
# Pure-JAX f32 reference mirroring the PyTorch forward exactly (for correctness)
# ----------------------------------------------------------------------------
def made_forward_ref(params, x):
    r = params["raw"]
    h = x
    for (w, m, b) in r["layers"]:
        h = jnp.maximum(h @ (w * m).T + b, 0.0)
    eps = 1e-8
    logp = h @ (r["wp"] * r["mv"]).T + r["bp"] + x @ (r["wsp"] * r["ma"]).T + eps
    logq = h @ (r["wq"] * r["mv"]).T + r["bq"] + x @ (r["wsq"] * r["ma"]).T + eps
    A = jnp.maximum(logp, logq)
    normalizer = jnp.log(jnp.exp(logp - A) + jnp.exp(logq - A)) + A
    return jnp.exp(logp - normalizer)


if __name__ == "__main__":
    # TODO(synk): only forward() is implemented; sample()/logpdf()/propose() are
    # host-side autoregressive / loss wrappers around forward and are out of scope.
    D_observed, D_latent, H, num_layers = 8, 8, 32, 2
    B = 4

    key = jax.random.PRNGKey(0)
    k_param, k_x = jax.random.split(key)
    params = init_params(k_param, D_observed, D_latent, H, num_layers)

    # x = concat(parents, values): binary inputs, shape [B, D_observed + D_latent]
    x = jax.random.bernoulli(k_x, 0.5, (B, D_observed + D_latent)).astype(jnp.float32)

    out = jax.block_until_ready(made_forward(params, x))

    ref = made_forward_ref(params, x)
    assert out.shape == (B, D_latent)
    # bf16 weights/activations + approx reciprocal -> relaxed tolerance vs f32 ref.
    np.testing.assert_allclose(np.asarray(out), np.asarray(ref), rtol=2e-2, atol=5e-3)

    print("KERNEL_OK")
</pallas_src>

<mosaic_0001>
module attributes {stable_mosaic.version = 11 : i64} {
  func.func @kernel(%arg0: i32, %arg1: memref<128x128xbf16, #tpu.memory_space<vmem>>, %arg2: memref<128x128xbf16, #tpu.memory_space<vmem>>, %arg3: memref<1x128xbf16, #tpu.memory_space<vmem>>, %arg4: memref<128x128xbf16, #tpu.memory_space<vmem>>, %arg5: memref<1x128xbf16, #tpu.memory_space<vmem>>, %arg6: memref<256x128xbf16, #tpu.memory_space<vmem>>, %arg7: memref<1x128xbf16, #tpu.memory_space<vmem>>, %arg8: memref<128x128xf32, #tpu.memory_space<vmem>>) attributes {dimension_semantics = [#tpu.dimension_semantics<parallel>], iteration_bounds = array<i64: 1>, scalar_prefetch = 0 : i64, scratch_operands = 0 : i64, tpu.core_type = #tpu.core_type<tc>, window_params = [{transform_indices = @transform_0, window_bounds = array<i64: 128, 128>}, {pipeline_mode = #tpu.pipeline_mode<synchronous>, transform_indices = @transform_1, window_bounds = array<i64: 128, 128>}, {pipeline_mode = #tpu.pipeline_mode<synchronous>, transform_indices = @transform_2, window_bounds = array<i64: 1, 128>}, {pipeline_mode = #tpu.pipeline_mode<synchronous>, transform_indices = @transform_3, window_bounds = array<i64: 128, 128>}, {pipeline_mode = #tpu.pipeline_mode<synchronous>, transform_indices = @transform_4, window_bounds = array<i64: 1, 128>}, {pipeline_mode = #tpu.pipeline_mode<synchronous>, transform_indices = @transform_5, window_bounds = array<i64: 256, 128>}, {pipeline_mode = #tpu.pipeline_mode<synchronous>, transform_indices = @transform_6, window_bounds = array<i64: 1, 128>}, {transform_indices = @transform_7, window_bounds = array<i64: 128, 128>}]} {
    %c0 = arith.constant 0 : index
    %c0_0 = arith.constant 0 : index
    %0 = vector.load %arg1[%c0, %c0_0] : memref<128x128xbf16, #tpu.memory_space<vmem>>, vector<128x128xbf16>
    %c0_1 = arith.constant 0 : index
    %c0_2 = arith.constant 0 : index
    %1 = vector.load %arg2[%c0_1, %c0_2] : memref<128x128xbf16, #tpu.memory_space<vmem>>, vector<128x128xbf16>
    %cst = arith.constant dense<0.000000e+00> : vector<128x128xf32>
    %2 = tpu.matmul %0, %1, %cst {dimension_numbers = #tpu.dot_dimension_numbers<[1], [0], [0], [1], [0, 0, 1, 1], [], []>} : vector<128x128xbf16>, vector<128x128xbf16>, vector<128x128xf32> -> vector<128x128xf32>
    %c0_3 = arith.constant 0 : index
    %c0_4 = arith.constant 0 : index
    %3 = vector.load %arg3[%c0_3, %c0_4] : memref<1x128xbf16, #tpu.memory_space<vmem>>, vector<1x128xbf16>
    %4 = arith.extf %3 : vector<1x128xbf16> to vector<1x128xf32>
    %5 = vector.broadcast %4 : vector<1x128xf32> to vector<128x128xf32>
    %6 = arith.addf %2, %5 : vector<128x128xf32>
    %cst_5 = arith.constant 0.000000e+00 : f32
    %7 = vector.broadcast %cst_5 : f32 to vector<128x128xf32>
    %8 = arith.maximumf %6, %7 : vector<128x128xf32>
    %9 = arith.truncf %8 : vector<128x128xf32> to vector<128x128xbf16>
    %c0_6 = arith.constant 0 : index
    %c0_7 = arith.constant 0 : index
    %10 = vector.load %arg4[%c0_6, %c0_7] : memref<128x128xbf16, #tpu.memory_space<vmem>>, vector<128x128xbf16>
    %cst_8 = arith.constant dense<0.000000e+00> : vector<128x128xf32>
    %11 = tpu.matmul %9, %10, %cst_8 {dimension_numbers = #tpu.dot_dimension_numbers<[1], [0], [0], [1], [0, 0, 1, 1], [], []>} : vector<128x128xbf16>, vector<128x128xbf16>, vector<128x128xf32> -> vector<128x128xf32>
    %c0_9 = arith.constant 0 : index
    %c0_10 = arith.constant 0 : index
    %12 = vector.load %arg5[%c0_9, %c0_10] : memref<1x128xbf16, #tpu.memory_space<vmem>>, vector<1x128xbf16>
    %13 = arith.extf %12 : vector<1x128xbf16> to vector<1x128xf32>
    %14 = vector.broadcast %13 : vector<1x128xf32> to vector<128x128xf32>
    %15 = arith.addf %11, %14 : vector<128x128xf32>
    %cst_11 = arith.constant 0.000000e+00 : f32
    %16 = vector.broadcast %cst_11 : f32 to vector<128x128xf32>
    %17 = arith.maximumf %15, %16 : vector<128x128xf32>
    %18 = arith.truncf %17 : vector<128x128xf32> to vector<128x128xbf16>
    %19 = tpu.concatenate %18, %0 in 1 : vector<128x128xbf16>, vector<128x128xbf16> -> vector<128x256xbf16>
    %c0_12 = arith.constant 0 : index
    %c0_13 = arith.constant 0 : index
    %20 = vector.load %arg6[%c0_12, %c0_13] : memref<256x128xbf16, #tpu.memory_space<vmem>>, vector<256x128xbf16>
    %cst_14 = arith.constant dense<0.000000e+00> : vector<128x128xf32>
    %21 = tpu.matmul %19, %20, %cst_14 {dimension_numbers = #tpu.dot_dimension_numbers<[1], [0], [0], [1], [0, 0, 1, 1], [], []>} : vector<128x256xbf16>, vector<256x128xbf16>, vector<128x128xf32> -> vector<128x128xf32>
    %c0_15 = arith.constant 0 : index
    %c0_16 = arith.constant 0 : index
    %22 = vector.load %arg7[%c0_15, %c0_16] : memref<1x128xbf16, #tpu.memory_space<vmem>>, vector<1x128xbf16>
    %23 = arith.extf %22 : vector<1x128xbf16> to vector<1x128xf32>
    %24 = vector.broadcast %23 : vector<1x128xf32> to vector<128x128xf32>
    %25 = arith.addf %21, %24 : vector<128x128xf32>
    %cst_17 = arith.constant 0.000000e+00 : f32
    %26 = vector.broadcast %cst_17 : f32 to vector<128x128xf32>
    %27 = arith.subf %26, %25 : vector<128x128xf32>
    %28 = math.exp %27 : vector<128x128xf32>
    %cst_18 = arith.constant 1.000000e+00 : f32
    %29 = vector.broadcast %cst_18 : f32 to vector<128x128xf32>
    %30 = arith.addf %29, %28 : vector<128x128xf32>
    %31 = tpu.reciprocal %30 {approx = true} : vector<128x128xf32> -> vector<128x128xf32>
    %c0_19 = arith.constant 0 : index
    %c0_20 = arith.constant 0 : index
    %32 = vector.load %arg8[%c0_19, %c0_20] : memref<128x128xf32, #tpu.memory_space<vmem>>, vector<128x128xf32>
    tpu.vector_store %arg8[%c0_19, %c0_20], %31 {strides = array<i32>} : memref<128x128xf32, #tpu.memory_space<vmem>>, vector<128x128xf32>,
    return
  }
  func.func @transform_0(%arg0: i32) -> (i32, i32) {
    %c0_i32 = arith.constant 0 : i32
    %c0_i32_0 = arith.constant 0 : i32
    return %arg0, %c0_i32 : i32, i32
  }
  func.func @transform_1(%arg0: i32) -> (i32, i32) {
    %c0_i32 = arith.constant 0 : i32
    %c0_i32_0 = arith.constant 0 : i32
    %c0_i32_1 = arith.constant 0 : i32
    return %c0_i32, %c0_i32_0 : i32, i32
  }
  func.func @transform_2(%arg0: i32) -> (i32, i32) {
    %c0_i32 = arith.constant 0 : i32
    %c0_i32_0 = arith.constant 0 : i32
    %c0_i32_1 = arith.constant 0 : i32
    return %c0_i32, %c0_i32_0 : i32, i32
  }
  func.func @transform_3(%arg0: i32) -> (i32, i32) {
    %c0_i32 = arith.constant 0 : i32
    %c0_i32_0 = arith.constant 0 : i32
    %c0_i32_1 = arith.constant 0 : i32
    return %c0_i32, %c0_i32_0 : i32, i32
  }
  func.func @transform_4(%arg0: i32) -> (i32, i32) {
    %c0_i32 = arith.constant 0 : i32
    %c0_i32_0 = arith.constant 0 : i32
    %c0_i32_1 = arith.constant 0 : i32
    return %c0_i32, %c0_i32_0 : i32, i32
  }
  func.func @transform_5(%arg0: i32) -> (i32, i32) {
    %c0_i32 = arith.constant 0 : i32
    %c0_i32_0 = arith.constant 0 : i32
    %c0_i32_1 = arith.constant 0 : i32
    return %c0_i32, %c0_i32_0 : i32, i32
  }
  func.func @transform_6(%arg0: i32) -> (i32, i32) {
    %c0_i32 = arith.constant 0 : i32
    %c0_i32_0 = arith.constant 0 : i32
    %c0_i32_1 = arith.constant 0 : i32
    return %c0_i32, %c0_i32_0 : i32, i32
  }
  func.func @transform_7(%arg0: i32) -> (i32, i32) {
    %c0_i32 = arith.constant 0 : i32
    %c0_i32_0 = arith.constant 0 : i32
    return %arg0, %c0_i32 : i32, i32
  }
}

module attributes {stable_mosaic.version = 11 : i64} {
  func.func @kernel(%arg0: i32, %arg1: memref<128x128xbf16, #tpu.memory_space<vmem>>, %arg2: memref<128x128xbf16, #tpu.memory_space<vmem>>, %arg3: memref<1x128xbf16, #tpu.memory_space<vmem>>, %arg4: memref<128x128xbf16, #tpu.memory_space<vmem>>, %arg5: memref<1x128xbf16, #tpu.memory_space<vmem>>, %arg6: memref<256x128xbf16, #tpu.memory_space<vmem>>, %arg7: memref<1x128xbf16, #tpu.memory_space<vmem>>, %arg8: memref<128x128xf32, #tpu.memory_space<vmem>>) attributes {dimension_semantics = [#tpu.dimension_semantics<parallel>], iteration_bounds = array<i64: 1>, scalar_prefetch = 0 : i64, scratch_operands = 0 : i64, tpu.core_type = #tpu.core_type<tc>, window_params = [{transform_indices = @transform_0, window_bounds = array<i64: 128, 128>}, {pipeline_mode = #tpu.pipeline_mode<synchronous>, transform_indices = @transform_1, window_bounds = array<i64: 128, 128>}, {pipeline_mode = #tpu.pipeline_mode<synchronous>, transform_indices = @transform_2, window_bounds = array<i64: 1, 128>}, {pipeline_mode = #tpu.pipeline_mode<synchronous>, transform_indices = @transform_3, window_bounds = array<i64: 128, 128>}, {pipeline_mode = #tpu.pipeline_mode<synchronous>, transform_indices = @transform_4, window_bounds = array<i64: 1, 128>}, {pipeline_mode = #tpu.pipeline_mode<synchronous>, transform_indices = @transform_5, window_bounds = array<i64: 256, 128>}, {pipeline_mode = #tpu.pipeline_mode<synchronous>, transform_indices = @transform_6, window_bounds = array<i64: 1, 128>}, {transform_indices = @transform_7, window_bounds = array<i64: 128, 128>}]} {
    %c0 = arith.constant 0 : index
    %c0_0 = arith.constant 0 : index
    %0 = vector.load %arg1[%c0, %c0_0] : memref<128x128xbf16, #tpu.memory_space<vmem>>, vector<128x128xbf16>
    %c0_1 = arith.constant 0 : index
    %c0_2 = arith.constant 0 : index
    %1 = vector.load %arg2[%c0_1, %c0_2] : memref<128x128xbf16, #tpu.memory_space<vmem>>, vector<128x128xbf16>
    %cst = arith.constant dense<0.000000e+00> : vector<128x128xf32>
    %2 = tpu.matmul %0, %1, %cst {dimension_numbers = #tpu.dot_dimension_numbers<[1], [0], [0], [1], [0, 0, 1, 1], [], []>} : vector<128x128xbf16>, vector<128x128xbf16>, vector<128x128xf32> -> vector<128x128xf32>
    %c0_3 = arith.constant 0 : index
    %c0_4 = arith.constant 0 : index
    %3 = vector.load %arg3[%c0_3, %c0_4] : memref<1x128xbf16, #tpu.memory_space<vmem>>, vector<1x128xbf16>
    %4 = arith.extf %3 : vector<1x128xbf16> to vector<1x128xf32>
    %5 = vector.broadcast %4 : vector<1x128xf32> to vector<128x128xf32>
    %6 = arith.addf %2, %5 : vector<128x128xf32>
    %cst_5 = arith.constant 0.000000e+00 : f32
    %7 = vector.broadcast %cst_5 : f32 to vector<128x128xf32>
    %8 = arith.maximumf %6, %7 : vector<128x128xf32>
    %9 = arith.truncf %8 : vector<128x128xf32> to vector<128x128xbf16>
    %c0_6 = arith.constant 0 : index
    %c0_7 = arith.constant 0 : index
    %10 = vector.load %arg4[%c0_6, %c0_7] : memref<128x128xbf16, #tpu.memory_space<vmem>>, vector<128x128xbf16>
    %cst_8 = arith.constant dense<0.000000e+00> : vector<128x128xf32>
    %11 = tpu.matmul %9, %10, %cst_8 {dimension_numbers = #tpu.dot_dimension_numbers<[1], [0], [0], [1], [0, 0, 1, 1], [], []>} : vector<128x128xbf16>, vector<128x128xbf16>, vector<128x128xf32> -> vector<128x128xf32>
    %c0_9 = arith.constant 0 : index
    %c0_10 = arith.constant 0 : index
    %12 = vector.load %arg5[%c0_9, %c0_10] : memref<1x128xbf16, #tpu.memory_space<vmem>>, vector<1x128xbf16>
    %13 = arith.extf %12 : vector<1x128xbf16> to vector<1x128xf32>
    %14 = vector.broadcast %13 : vector<1x128xf32> to vector<128x128xf32>
    %15 = arith.addf %11, %14 : vector<128x128xf32>
    %cst_11 = arith.constant 0.000000e+00 : f32
    %16 = vector.broadcast %cst_11 : f32 to vector<128x128xf32>
    %17 = arith.maximumf %15, %16 : vector<128x128xf32>
    %18 = arith.truncf %17 : vector<128x128xf32> to vector<128x128xbf16>
    %19 = tpu.concatenate %18, %0 in 1 : vector<128x128xbf16>, vector<128x128xbf16> -> vector<128x256xbf16>
    %c0_12 = arith.constant 0 : index
    %c0_13 = arith.constant 0 : index
    %20 = vector.load %arg6[%c0_12, %c0_13] : memref<256x128xbf16, #tpu.memory_space<vmem>>, vector<256x128xbf16>
    %cst_14 = arith.constant dense<0.000000e+00> : vector<128x128xf32>
    %21 = tpu.matmul %19, %20, %cst_14 {dimension_numbers = #tpu.dot_dimension_numbers<[1], [0], [0], [1], [0, 0, 1, 1], [], []>} : vector<128x256xbf16>, vector<256x128xbf16>, vector<128x128xf32> -> vector<128x128xf32>
    %c0_15 = arith.constant 0 : index
    %c0_16 = arith.constant 0 : index
    %22 = vector.load %arg7[%c0_15, %c0_16] : memref<1x128xbf16, #tpu.memory_space<vmem>>, vector<1x128xbf16>
    %23 = arith.extf %22 : vector<1x128xbf16> to vector<1x128xf32>
    %24 = vector.broadcast %23 : vector<1x128xf32> to vector<128x128xf32>
    %25 = arith.addf %21, %24 : vector<128x128xf32>
    %cst_17 = arith.constant 0.000000e+00 : f32
    %26 = vector.broadcast %cst_17 : f32 to vector<128x128xf32>
    %27 = arith.subf %26, %25 : vector<128x128xf32>
    %28 = math.exp %27 : vector<128x128xf32>
    %cst_18 = arith.constant 1.000000e+00 : f32
    %29 = vector.broadcast %cst_18 : f32 to vector<128x128xf32>
    %30 = arith.addf %29, %28 : vector<128x128xf32>
    %31 = tpu.reciprocal %30 {approx = true} : vector<128x128xf32> -> vector<128x128xf32>
    %c0_19 = arith.constant 0 : index
    %c0_20 = arith.constant 0 : index
    %32 = vector.load %arg8[%c0_19, %c0_20] : memref<128x128xf32, #tpu.memory_space<vmem>>, vector<128x128xf32>
    tpu.vector_store %arg8[%c0_19, %c0_20], %31 {strides = array<i32>} : memref<128x128xf32, #tpu.memory_space<vmem>>, vector<128x128xf32>,
    return
  }
  func.func @transform_0(%arg0: i32) -> (i32, i32) {
    %c0_i32 = arith.constant 0 : i32
    %c0_i32_0 = arith.constant 0 : i32
    return %arg0, %c0_i32 : i32, i32
  }
  func.func @transform_1(%arg0: i32) -> (i32, i32) {
    %c0_i32 = arith.constant 0 : i32
    %c0_i32_0 = arith.constant 0 : i32
    %c0_i32_1 = arith.constant 0 : i32
    return %c0_i32, %c0_i32_0 : i32, i32
  }
  func.func @transform_2(%arg0: i32) -> (i32, i32) {
    %c0_i32 = arith.constant 0 : i32
    %c0_i32_0 = arith.constant 0 : i32
    %c0_i32_1 = arith.constant 0 : i32
    return %c0_i32, %c0_i32_0 : i32, i32
  }
  func.func @transform_3(%arg0: i32) -> (i32, i32) {
    %c0_i32 = arith.constant 0 : i32
    %c0_i32_0 = arith.constant 0 : i32
    %c0_i32_1 = arith.constant 0 : i32
    return %c0_i32, %c0_i32_0 : i32, i32
  }
  func.func @transform_4(%arg0: i32) -> (i32, i32) {
    %c0_i32 = arith.constant 0 : i32
    %c0_i32_0 = arith.constant 0 : i32
    %c0_i32_1 = arith.constant 0 : i32
    return %c0_i32, %c0_i32_0 : i32, i32
  }
  func.func @transform_5(%arg0: i32) -> (i32, i32) {
    %c0_i32 = arith.constant 0 : i32
    %c0_i32_0 = arith.constant 0 : i32
    %c0_i32_1 = arith.constant 0 : i32
    return %c0_i32, %c0_i32_0 : i32, i32
  }
  func.func @transform_6(%arg0: i32) -> (i32, i32) {
    %c0_i32 = arith.constant 0 : i32
    %c0_i32_0 = arith.constant 0 : i32
    %c0_i32_1 = arith.constant 0 : i32
    return %c0_i32, %c0_i32_0 : i32, i32
  }
  func.func @transform_7(%arg0: i32) -> (i32, i32) {
    %c0_i32 = arith.constant 0 : i32
    %c0_i32_0 = arith.constant 0 : i32
    return %arg0, %c0_i32 : i32, i32
  }
}

</mosaic_0001>

<llo_original>
// kernel: tpu_custom_call.1
$region0: #{tpu_custom_call.1}
  #allocation0 [shape = 'u32[]', space=smem, size = 0x4, offset = 0x4, fixed_abs, tag = 'smem constant byte address 0x4 - core index']
  #allocation1 [shape = 'u32[72,128]{1,0:T(1,128)}', space=vmem, size = 0x9000, scoped, tag = 'internal scratch']
  %s0 = inlined_call_operand.hbm [shape: bf16[128,128], index: 0, kind: input, shape index: {}]
  %s1 = inlined_call_operand.hbm [shape: bf16[128,128], index: 1, kind: input, shape index: {}]
  %s2 = inlined_call_operand.vmem [shape: bf16[1,128], index: 2, kind: input, shape index: {}]
  %s3 = inlined_call_operand.hbm [shape: bf16[128,128], index: 3, kind: input, shape index: {}]
  %s4 = inlined_call_operand.vmem [shape: bf16[1,128], index: 4, kind: input, shape index: {}]
  %s5 = inlined_call_operand.hbm [shape: bf16[256,128], index: 5, kind: input, shape index: {}]
  %s6 = inlined_call_operand.vmem [shape: bf16[1,128], index: 6, kind: input, shape index: {}]
  %s7 = inlined_call_operand.hbm [shape: f32[128,128], index: 7, kind: output, shape index: {}]
  %s8 = sld [smem:[#allocation0]]
  $region54: #{tpu_custom_call.1} parent=0
    _
  %s10 = ssub.s32 1, %s8
  %s11 = scalar_select 0, %s10, %s8
  $region1: #{tpu_custom_call.1} parent=0
    #allocation2 [shape = 'u8[32768]{0}', space=vmem, size = 0x8000, scoped, tag = 'input window, operand 0, single buffered']
    #allocation3 [shape = 's32[1]{0}', space=sflag, size = 0x4, scoped, tag = 'scoped memory for tpu_custom_call.1']
    #allocation4 [shape = 's32[1]{0}', space=sflag, size = 0x4, scoped, tag = 'scoped memory for tpu_custom_call.1']
    #allocation5 [shape = 'u8[32768]{0}', space=vmem, size = 0x8000, scoped, tag = 'input window, operand 1, single buffered']
    #allocation6 [shape = 's32[1]{0}', space=sflag, size = 0x4, scoped, tag = 'scoped memory for tpu_custom_call.1']
    #allocation7 [shape = 'u8[32768]{0}', space=vmem, size = 0x8000, scoped, tag = 'input window, operand 3, single buffered']
    #allocation8 [shape = 'u8[65536]{0}', space=vmem, size = 0x10000, scoped, tag = 'input window, operand 5, single buffered']
    #allocation9 [shape = 's32[1]{0}', space=sflag, size = 0x4, scoped, tag = 'scoped memory for tpu_custom_call.1']
    #allocation10 [shape = 'u8[65536]{0}', space=vmem, size = 0x10000, scoped, tag = 'output window, operand 0, single buffered']
    %12 = vsyncpa [#allocation3], 0
    %13 = vsyncpa [#allocation6], 0
    %14 = vsyncpa [#allocation9], 0
    %15 = vsyncpa [#allocation4], 0
    // Predicated region
    $region2: #{tpu_custom_call.1} parent=1 // pred_check
      _
    $region3: #{tpu_custom_call.1} parent=1 // pred_check_branch
      %17 = sbr.rel (0) target = $region5
    $region4: #{tpu_custom_call.1} parent=1 // pred_region
      %19 = vsyncadd [#allocation3], 0
      %s20 = sshll.u32 %s0, 4
      %s21 = int_to_ptr.hbm [resolvable:$true] %s20
      %s22 = sshll.u32 [#allocation2], 4
      %s23 = int_to_ptr.vmem [resolvable:$true] %s22
      %28 = dma.hbm_to_vmem [thread:$0]  %s21, 1024, %s23, [#allocation3], 64, 64, 4
    $region5: #{tpu_custom_call.1} parent=1 // pred_fallthru
      _
    // Predicated region
    $region6: #{tpu_custom_call.1} parent=1 // pred_check
      _
    $region7: #{tpu_custom_call.1} parent=1 // pred_check_branch
      %30 = sbr.rel (0) target = $region9
    $region8: #{tpu_custom_call.1} parent=1 // pred_region
      %32 = vsyncadd [#allocation6], 0
      %s33 = sshll.u32 %s1, 4
      %s34 = int_to_ptr.hbm [resolvable:$true] %s33
      %s35 = sshll.u32 [#allocation5], 4
      %s36 = int_to_ptr.vmem [resolvable:$true] %s35
      %41 = dma.hbm_to_vmem [thread:$0]  %s34, 1024, %s36, [#allocation6], 64, 64, 4
    $region9: #{tpu_custom_call.1} parent=1 // pred_fallthru
      _
    // Predicated region
    $region10: #{tpu_custom_call.1} parent=1 // pred_check
      _
    $region11: #{tpu_custom_call.1} parent=1 // pred_check_branch
      %43 = sbr.rel (0) target = $region13
    $region12: #{tpu_custom_call.1} parent=1 // pred_region
      _
    $region13: #{tpu_custom_call.1} parent=1 // pred_fallthru
      _
    // Predicated region
    $region14: #{tpu_custom_call.1} parent=1 // pred_check
      _
    $region15: #{tpu_custom_call.1} parent=1 // pred_check_branch
      %45 = sbr.rel (0) target = $region17
    $region16: #{tpu_custom_call.1} parent=1 // pred_region
      %47 = vsyncadd [#allocation6], 0
      %s48 = sshll.u32 %s3, 4
      %s49 = int_to_ptr.hbm [resolvable:$true] %s48
      %s50 = sshll.u32 [#allocation7], 4
      %s51 = int_to_ptr.vmem [resolvable:$true] %s50
      %56 = dma.hbm_to_vmem [thread:$0]  %s49, 1024, %s51, [#allocation6], 64, 64, 4
    $region17: #{tpu_custom_call.1} parent=1 // pred_fallthru
      _
    // Predicated region
    $region18: #{tpu_custom_call.1} parent=1 // pred_check
      _
    $region19: #{tpu_custom_call.1} parent=1 // pred_check_branch
      %58 = sbr.rel (0) target = $region21
    $region20: #{tpu_custom_call.1} parent=1 // pred_region
      _
    $region21: #{tpu_custom_call.1} parent=1 // pred_fallthru
      _
    // Predicated region
    $region22: #{tpu_custom_call.1} parent=1 // pred_check
      _
    $region23: #{tpu_custom_call.1} parent=1 // pred_check_branch
      %60 = sbr.rel (0) target = $region25
    $region24: #{tpu_custom_call.1} parent=1 // pred_region
      %62 = vsyncadd [#allocation9], 0
      %s63 = sshll.u32 %s5, 4
      %s64 = int_to_ptr.hbm [resolvable:$true] %s63
      %s65 = sshll.u32 [#allocation8], 4
      %s66 = int_to_ptr.vmem [resolvable:$true] %s65
      %71 = dma.hbm_to_vmem [thread:$0]  %s64, 2048, %s66, [#allocation9], 64, 64, 4
    $region25: #{tpu_custom_call.1} parent=1 // pred_fallthru
      _
    // Predicated region
    $region26: #{tpu_custom_call.1} parent=1 // pred_check
      _
    $region27: #{tpu_custom_call.1} parent=1 // pred_check_branch
      %73 = sbr.rel (0) target = $region29
    $region28: #{tpu_custom_call.1} parent=1 // pred_region
      _
    $region29: #{tpu_custom_call.1} parent=1 // pred_fallthru
      _
    // Predicated region
    $region30: #{tpu_custom_call.1} parent=1 // pred_check
      _
    $region31: #{tpu_custom_call.1} parent=1 // pred_check_branch
      %75 = sbr.rel (0) target = $region33
    $region32: #{tpu_custom_call.1} parent=1 // pred_region
      %77 = dma.done [#allocation3], 1024
    $region33: #{tpu_custom_call.1} parent=1 // pred_fallthru
      _
    // Predicated region
    $region34: #{tpu_custom_call.1} parent=1 // pred_check
      _
    $region35: #{tpu_custom_call.1} parent=1 // pred_check_branch
      %79 = sbr.rel (0) target = $region37
    $region36: #{tpu_custom_call.1} parent=1 // pred_region
      %81 = dma.done [#allocation6], 1024
    $region37: #{tpu_custom_call.1} parent=1 // pred_fallthru
      _
    // Predicated region
    $region38: #{tpu_custom_call.1} parent=1 // pred_check
      _
    $region39: #{tpu_custom_call.1} parent=1 // pred_check_branch
      %83 = sbr.rel (0) target = $region41
    $region40: #{tpu_custom_call.1} parent=1 // pred_region
      %85 = dma.done [#allocation6], 1024
    $region41: #{tpu_custom_call.1} parent=1 // pred_fallthru
      _
    // Predicated region
    $region42: #{tpu_custom_call.1} parent=1 // pred_check
      _
    $region43: #{tpu_custom_call.1} parent=1 // pred_check_branch
      %87 = sbr.rel (0) target = $region45
    $region44: #{tpu_custom_call.1} parent=1 // pred_region
      %89 = dma.done [#allocation9], 2048
    $region45: #{tpu_custom_call.1} parent=1 // pred_fallthru
      _
    %v90 = vld [vmem:[#allocation2] sm:$0xf]
    %v91 = vld [vmem:[#allocation2 + $0x4] sm:$0xf]
    %v92 = vld [vmem:[#allocation2 + $0x8] sm:$0xf]
    %v93 = vld [vmem:[#allocation2 + $0xc] sm:$0xf]
    %v94 = vld [vmem:[#allocation2 + $0x10] sm:$0xf]
    %v95 = vld [vmem:[#allocation2 + $0x14] sm:$0xf]
    %v96 = vld [vmem:[#allocation2 + $0x18] sm:$0xf]
    %v97 = vld [vmem:[#allocation2 + $0x1c] sm:$0xf]
    %v98 = vld [vmem:[#allocation2 + $0x20] sm:$0xf]
    %v99 = vld [vmem:[#allocation2 + $0x24] sm:$0xf]
    %v100 = vld [vmem:[#allocation2 + $0x28] sm:$0xf]
    %v101 = vld [vmem:[#allocation2 + $0x2c] sm:$0xf]
    %v102 = vld [vmem:[#allocation2 + $0x30] sm:$0xf]
    %v103 = vld [vmem:[#allocation2 + $0x34] sm:$0xf]
    %v104 = vld [vmem:[#allocation2 + $0x38] sm:$0xf]
    %v105 = vld [vmem:[#allocation2 + $0x3c] sm:$0xf]
    %v106 = vld [vmem:[#allocation5] sm:$0xf]
    %v107 = vld [vmem:[#allocation5 + $0x4] sm:$0xf]
    %v108 = vld [vmem:[#allocation5 + $0x8] sm:$0xf]
    %v109 = vld [vmem:[#allocation5 + $0xc] sm:$0xf]
    %v110 = vld [vmem:[#allocation5 + $0x10] sm:$0xf]
    %v111 = vld [vmem:[#allocation5 + $0x14] sm:$0xf]
    %v112 = vld [vmem:[#allocation5 + $0x18] sm:$0xf]
    %v113 = vld [vmem:[#allocation5 + $0x1c] sm:$0xf]
    %v114 = vld [vmem:[#allocation5 + $0x20] sm:$0xf]
    %v115 = vld [vmem:[#allocation5 + $0x24] sm:$0xf]
    %v116 = vld [vmem:[#allocation5 + $0x28] sm:$0xf]
    %v117 = vld [vmem:[#allocation5 + $0x2c] sm:$0xf]
    %v118 = vld [vmem:[#allocation5 + $0x30] sm:$0xf]
    %v119 = vld [vmem:[#allocation5 + $0x34] sm:$0xf]
    %v120 = vld [vmem:[#allocation5 + $0x38] sm:$0xf]
    %v121 = vld [vmem:[#allocation5 + $0x3c] sm:$0xf]
    %v122 = vld [vmem:[%s2] sm:$0x1]
    %v123 = vunpack.c.l.bf16 %v122
    %v124 = vperm.slane %v123, 0
    %v141 = vunpack.c.l.b16 %v90
    %v142 = vunpack.c.l.b16 %v91
    %v143 = vunpack.c.l.b16 %v92
    %v144 = vunpack.c.l.b16 %v93
    %v145 = vunpack.c.l.b16 %v94
    %v146 = vunpack.c.l.b16 %v95
    %v147 = vunpack.c.l.b16 %v96
    %v148 = vunpack.c.l.b16 %v97
    %v149 = vunpack.c.l.b16 %v98
    %v150 = vunpack.c.l.b16 %v99
    %v151 = vunpack.c.l.b16 %v100
    %v152 = vunpack.c.l.b16 %v101
    %v153 = vunpack.c.l.b16 %v102
    %v154 = vunpack.c.l.b16 %v103
    %v155 = vunpack.c.l.b16 %v104
    %v156 = vunpack.c.l.b16 %v105
    %v157 = vpack.c.b16 %v142, %v141
    %v158 = vpack.c.b16 %v144, %v143
    %v159 = vpack.c.b16 %v146, %v145
    %v160 = vpack.c.b16 %v148, %v147
    %v161 = vpack.c.b16 %v150, %v149
    %v162 = vpack.c.b16 %v152, %v151
    %v163 = vpack.c.b16 %v154, %v153
    %v164 = vpack.c.b16 %v156, %v155
    %v189 = vunpack.c.l.b16 %v106
    %v190 = vunpack.c.l.b16 %v107
    %v191 = vunpack.c.l.b16 %v108
    %v192 = vunpack.c.l.b16 %v109
    %v193 = vunpack.c.l.b16 %v110
    %v194 = vunpack.c.l.b16 %v111
    %v195 = vunpack.c.l.b16 %v112
    %v196 = vunpack.c.l.b16 %v113
    %v197 = vunpack.c.l.b16 %v114
    %v198 = vunpack.c.l.b16 %v115
    %v199 = vunpack.c.l.b16 %v116
    %v200 = vunpack.c.l.b16 %v117
    %v201 = vunpack.c.l.b16 %v118
    %v202 = vunpack.c.l.b16 %v119
    %v203 = vunpack.c.l.b16 %v120
    %v204 = vunpack.c.l.b16 %v121
    %v205 = vpack.c.b16 %v190, %v189
    %v206 = vpack.c.b16 %v192, %v191
    %v207 = vpack.c.b16 %v194, %v193
    %v208 = vpack.c.b16 %v196, %v195
    %v209 = vpack.c.b16 %v198, %v197
    %v210 = vpack.c.b16 %v200, %v199
    %v211 = vpack.c.b16 %v202, %v201
    %v212 = vpack.c.b16 %v204, %v203
    %221 = vmatpush.bf16.msra.mxu0 %v212
    %222 = vmatpush.bf16.msra.mxu0 %v211
    %223 = vmatpush.bf16.msra.mxu0 %v210
    %224 = vmatpush.bf16.msra.mxu0 %v209
    %225 = vmatpush.bf16.msra.mxu0 %v208
    %226 = vmatpush.bf16.msra.mxu0 %v207
    %227 = vmatpush.bf16.msra.mxu0 %v206
    %228 = vmatpush.bf16.msra.mxu0 %v205
    %229 = vmatmul.bf16.gmra.mxu0 %v157
    %v230 = vpop.f32.mrf.mxu0
    %v231 = vadd.f32 %v124, %v230
    %v232 = vpop.f32.mrf.mxu0
    %v233 = vadd.f32 %v124, %v232
    %234 = vmatmul.bf16.gmra.mxu0 %v158
    %v235 = vpop.f32.mrf.mxu0
    %v236 = vadd.f32 %v124, %v235
    %v237 = vpop.f32.mrf.mxu0
    %v238 = vadd.f32 %v124, %v237
    %239 = vmatmul.bf16.gmra.mxu0 %v159
    %v240 = vpop.f32.mrf.mxu0
    %v241 = vadd.f32 %v124, %v240
    %v242 = vpop.f32.mrf.mxu0
    %v243 = vadd.f32 %v124, %v242
    %244 = vmatmul.bf16.gmra.mxu0 %v160
    %v245 = vpop.f32.mrf.mxu0
    %v246 = vadd.f32 %v124, %v245
    %v247 = vpop.f32.mrf.mxu0
    %v248 = vadd.f32 %v124, %v247
    %249 = vmatmul.bf16.gmra.mxu0 %v161
    %v250 = vpop.f32.mrf.mxu0
    %v251 = vadd.f32 %v124, %v250
    %v252 = vpop.f32.mrf.mxu0
    %v253 = vadd.f32 %v124, %v252
    %254 = vmatmul.bf16.gmra.mxu0 %v162
    %v255 = vpop.f32.mrf.mxu0
    %v256 = vadd.f32 %v124, %v255
    %v257 = vpop.f32.mrf.mxu0
    %v258 = vadd.f32 %v124, %v257
    %259 = vmatmul.bf16.gmra.mxu0 %v163
    %v260 = vpop.f32.mrf.mxu0
    %v261 = vadd.f32 %v124, %v260
    %v262 = vpop.f32.mrf.mxu0
    %v263 = vadd.f32 %v124, %v262
    %264 = vmatmul.bf16.gmra.mxu0 %v164
    %v265 = vpop.f32.mrf.mxu0
    %v266 = vadd.f32 %v124, %v265
    %v267 = vpop.f32.mrf.mxu0
    %v268 = vadd.f32 %v124, %v267
    %269 = vdwg.mxu0
    %v270 = vmax.f32 %v231, 0.0
    %v271 = vmax.f32 %v233, 0.0
    %v272 = vmax.f32 %v236, 0.0
    %v273 = vmax.f32 %v238, 0.0
    %v274 = vmax.f32 %v241, 0.0
    %v275 = vmax.f32 %v243, 0.0
    %v276 = vmax.f32 %v246, 0.0
    %v277 = vmax.f32 %v248, 0.0
    %v278 = vmax.f32 %v251, 0.0
    %v279 = vmax.f32 %v253, 0.0
    %v280 = vmax.f32 %v256, 0.0
    %v281 = vmax.f32 %v258, 0.0
    %v282 = vmax.f32 %v261, 0.0
    %v283 = vmax.f32 %v263, 0.0
    %v284 = vmax.f32 %v266, 0.0
    %v285 = vmax.f32 %v268, 0.0
    %v286 = vpack.c.bf16 %v271, %v270
    %v287 = vpack.c.bf16 %v273, %v272
    %v288 = vpack.c.bf16 %v275, %v274
    %v289 = vpack.c.bf16 %v277, %v276
    %v290 = vpack.c.bf16 %v279, %v278
    %v291 = vpack.c.bf16 %v281, %v280
    %v292 = vpack.c.bf16 %v283, %v282
    %v293 = vpack.c.bf16 %v285, %v284
    %v294 = vld [vmem:[#allocation7] sm:$0xf]
    %v295 = vld [vmem:[#allocation7 + $0x4] sm:$0xf]
    %v296 = vld [vmem:[#allocation7 + $0x8] sm:$0xf]
    %v297 = vld [vmem:[#allocation7 + $0xc] sm:$0xf]
    %v298 = vld [vmem:[#allocation7 + $0x10] sm:$0xf]
    %v299 = vld [vmem:[#allocation7 + $0x14] sm:$0xf]
    %v300 = vld [vmem:[#allocation7 + $0x18] sm:$0xf]
    %v301 = vld [vmem:[#allocation7 + $0x1c] sm:$0xf]
    %v302 = vld [vmem:[#allocation7 + $0x20] sm:$0xf]
    %v303 = vld [vmem:[#allocation7 + $0x24] sm:$0xf]
    %v304 = vld [vmem:[#allocation7 + $0x28] sm:$0xf]
    %v305 = vld [vmem:[#allocation7 + $0x2c] sm:$0xf]
    %v306 = vld [vmem:[#allocation7 + $0x30] sm:$0xf]
    %v307 = vld [vmem:[#allocation7 + $0x34] sm:$0xf]
    %v308 = vld [vmem:[#allocation7 + $0x38] sm:$0xf]
    %v309 = vld [vmem:[#allocation7 + $0x3c] sm:$0xf]
    %v310 = vld [vmem:[%s4] sm:$0x1]
    %v311 = vunpack.c.l.bf16 %v310
    %v312 = vperm.slane %v311, 0
    %v329 = vunpack.c.l.b16 %v294
    %v330 = vunpack.c.l.b16 %v295
    %v331 = vunpack.c.l.b16 %v296
    %v332 = vunpack.c.l.b16 %v297
    %v333 = vunpack.c.l.b16 %v298
    %v334 = vunpack.c.l.b16 %v299
    %v335 = vunpack.c.l.b16 %v300
    %v336 = vunpack.c.l.b16 %v301
    %v337 = vunpack.c.l.b16 %v302
    %v338 = vunpack.c.l.b16 %v303
    %v339 = vunpack.c.l.b16 %v304
    %v340 = vunpack.c.l.b16 %v305
    %v341 = vunpack.c.l.b16 %v306
    %v342 = vunpack.c.l.b16 %v307
    %v343 = vunpack.c.l.b16 %v308
    %v344 = vunpack.c.l.b16 %v309
    %v345 = vpack.c.b16 %v330, %v329
    %v346 = vpack.c.b16 %v332, %v331
    %v347 = vpack.c.b16 %v334, %v333
    %v348 = vpack.c.b16 %v336, %v335
    %v349 = vpack.c.b16 %v338, %v337
    %v350 = vpack.c.b16 %v340, %v339
    %v351 = vpack.c.b16 %v342, %v341
    %v352 = vpack.c.b16 %v344, %v343
    %361 = vmatpush.bf16.msra.mxu0 %v352
    %362 = vmatpush.bf16.msra.mxu0 %v351
    %363 = vmatpush.bf16.msra.mxu0 %v350
    %364 = vmatpush.bf16.msra.mxu0 %v349
    %365 = vmatpush.bf16.msra.mxu0 %v348
    %366 = vmatpush.bf16.msra.mxu0 %v347
    %367 = vmatpush.bf16.msra.mxu0 %v346
    %368 = vmatpush.bf16.msra.mxu0 %v345
    %369 = vmatmul.bf16.gmra.mxu0 %v286
    %v370 = vpop.f32.mrf.mxu0
    %v371 = vadd.f32 %v312, %v370
    %v372 = vpop.f32.mrf.mxu0
    %v373 = vadd.f32 %v312, %v372
    %374 = vmatmul.bf16.gmra.mxu0 %v287
    %v375 = vpop.f32.mrf.mxu0
    %v376 = vadd.f32 %v312, %v375
    %v377 = vpop.f32.mrf.mxu0
    %v378 = vadd.f32 %v312, %v377
    %379 = vmatmul.bf16.gmra.mxu0 %v288
    %v380 = vpop.f32.mrf.mxu0
    %v381 = vadd.f32 %v312, %v380
    %v382 = vpop.f32.mrf.mxu0
    %v383 = vadd.f32 %v312, %v382
    %384 = vmatmul.bf16.gmra.mxu0 %v289
    %v385 = vpop.f32.mrf.mxu0
    %v386 = vadd.f32 %v312, %v385
    %v387 = vpop.f32.mrf.mxu0
    %v388 = vadd.f32 %v312, %v387
    %389 = vmatmul.bf16.gmra.mxu0 %v290
    %v390 = vpop.f32.mrf.mxu0
    %v391 = vadd.f32 %v312, %v390
    %v392 = vpop.f32.mrf.mxu0
    %v393 = vadd.f32 %v312, %v392
    %394 = vmatmul.bf16.gmra.mxu0 %v291
    %v395 = vpop.f32.mrf.mxu0
    %v396 = vadd.f32 %v312, %v395
    %v397 = vpop.f32.mrf.mxu0
    %v398 = vadd.f32 %v312, %v397
    %399 = vmatmul.bf16.gmra.mxu0 %v292
    %v400 = vpop.f32.mrf.mxu0
    %v401 = vadd.f32 %v312, %v400
    %v402 = vpop.f32.mrf.mxu0
    %v403 = vadd.f32 %v312, %v402
    %404 = vmatmul.bf16.gmra.mxu0 %v293
    %v405 = vpop.f32.mrf.mxu0
    %v406 = vadd.f32 %v312, %v405
    %v407 = vpop.f32.mrf.mxu0
    %v408 = vadd.f32 %v312, %v407
    %409 = vdwg.mxu0
    %v410 = vmax.f32 %v371, 0.0
    %v411 = vmax.f32 %v373, 0.0
    %v412 = vmax.f32 %v376, 0.0
    %v413 = vmax.f32 %v378, 0.0
    %v414 = vmax.f32 %v381, 0.0
    %v415 = vmax.f32 %v383, 0.0
    %v416 = vmax.f32 %v386, 0.0
    %v417 = vmax.f32 %v388, 0.0
    %v418 = vmax.f32 %v391, 0.0
    %v419 = vmax.f32 %v393, 0.0
    %v420 = vmax.f32 %v396, 0.0
    %v421 = vmax.f32 %v398, 0.0
    %v422 = vmax.f32 %v401, 0.0
    %v423 = vmax.f32 %v403, 0.0
    %v424 = vmax.f32 %v406, 0.0
    %v425 = vmax.f32 %v408, 0.0
    %v426 = vpack.c.bf16 %v410, %v410
    %v427 = vpack.c.bf16 %v411, %v411
    %v428 = vpack.c.bf16 %v412, %v412
    %v429 = vpack.c.bf16 %v413, %v413
    %v430 = vpack.c.bf16 %v414, %v414
    %v431 = vpack.c.bf16 %v415, %v415
    %v432 = vpack.c.bf16 %v416, %v416
    %v433 = vpack.c.bf16 %v417, %v417
    %v434 = vpack.c.bf16 %v418, %v418
    %v435 = vpack.c.bf16 %v419, %v419
    %v436 = vpack.c.bf16 %v420, %v420
    %v437 = vpack.c.bf16 %v421, %v421
    %v438 = vpack.c.bf16 %v422, %v422
    %v439 = vpack.c.bf16 %v423, %v423
    %v440 = vpack.c.bf16 %v424, %v424
    %v441 = vpack.c.bf16 %v425, %v425
    %v458 = vunpack.c.l.b16 %v426
    %v459 = vunpack.c.l.b16 %v427
    %v460 = vunpack.c.l.b16 %v428
    %v461 = vunpack.c.l.b16 %v429
    %v462 = vunpack.c.l.b16 %v430
    %v463 = vunpack.c.l.b16 %v431
    %v464 = vunpack.c.l.b16 %v432
    %v465 = vunpack.c.l.b16 %v433
    %v466 = vunpack.c.l.b16 %v434
    %v467 = vunpack.c.l.b16 %v435
    %v468 = vunpack.c.l.b16 %v436
    %v469 = vunpack.c.l.b16 %v437
    %v470 = vunpack.c.l.b16 %v438
    %v471 = vunpack.c.l.b16 %v439
    %v472 = vunpack.c.l.b16 %v440
    %v473 = vunpack.c.l.b16 %v441
    %v474 = vpack.c.b16 %v459, %v458
    %v475 = vpack.c.b16 %v461, %v460
    %v476 = vpack.c.b16 %v463, %v462
    %v477 = vpack.c.b16 %v465, %v464
    %v478 = vpack.c.b16 %v467, %v466
    %v479 = vpack.c.b16 %v469, %v468
    %v480 = vpack.c.b16 %v471, %v470
    %v481 = vpack.c.b16 %v473, %v472
    %v490 = vld [vmem:[#allocation8] sm:$0xf]
    %v491 = vld [vmem:[#allocation8 + $0x4] sm:$0xf]
    %v492 = vld [vmem:[#allocation8 + $0x8] sm:$0xf]
    %v493 = vld [vmem:[#allocation8 + $0xc] sm:$0xf]
    %v494 = vld [vmem:[#allocation8 + $0x10] sm:$0xf]
    %v495 = vld [vmem:[#allocation8 + $0x14] sm:$0xf]
    %v496 = vld [vmem:[#allocation8 + $0x18] sm:$0xf]
    %v497 = vld [vmem:[#allocation8 + $0x1c] sm:$0xf]
    %v498 = vld [vmem:[#allocation8 + $0x20] sm:$0xf]
    %v499 = vld [vmem:[#allocation8 + $0x24] sm:$0xf]
    %v500 = vld [vmem:[#allocation8 + $0x28] sm:$0xf]
    %v501 = vld [vmem:[#allocation8 + $0x2c] sm:$0xf]
    %v502 = vld [vmem:[#allocation8 + $0x30] sm:$0xf]
    %v503 = vld [vmem:[#allocation8 + $0x34] sm:$0xf]
    %v504 = vld [vmem:[#allocation8 + $0x38] sm:$0xf]
    %v505 = vld [vmem:[#allocation8 + $0x3c] sm:$0xf]
    %v506 = vld [vmem:[#allocation8 + $0x40] sm:$0xf]
    %v507 = vld [vmem:[#allocation8 + $0x44] sm:$0xf]
    %v508 = vld [vmem:[#allocation8 + $0x48] sm:$0xf]
    %v509 = vld [vmem:[#allocation8 + $0x4c] sm:$0xf]
    %v510 = vld [vmem:[#allocation8 + $0x50] sm:$0xf]
    %v511 = vld [vmem:[#allocation8 + $0x54] sm:$0xf]
    %v512 = vld [vmem:[#allocation8 + $0x58] sm:$0xf]
    %v513 = vld [vmem:[#allocation8 + $0x5c] sm:$0xf]
    %v514 = vld [vmem:[#allocation8 + $0x60] sm:$0xf]
    %v515 = vld [vmem:[#allocation8 + $0x64] sm:$0xf]
    %v516 = vld [vmem:[#allocation8 + $0x68] sm:$0xf]
    %v517 = vld [vmem:[#allocation8 + $0x6c] sm:$0xf]
    %v518 = vld [vmem:[#allocation8 + $0x70] sm:$0xf]
    %v519 = vld [vmem:[#allocation8 + $0x74] sm:$0xf]
    %v520 = vld [vmem:[#allocation8 + $0x78] sm:$0xf]
    %v521 = vld [vmem:[#allocation8 + $0x7c] sm:$0xf]
    %v522 = vld [vmem:[%s6] sm:$0x1]
    %v523 = vunpack.c.l.bf16 %v522
    %v524 = vperm.slane %v523, 0
    %v557 = vunpack.c.l.b16 %v490
    %v558 = vunpack.c.l.b16 %v491
    %v559 = vunpack.c.l.b16 %v492
    %v560 = vunpack.c.l.b16 %v493
    %v561 = vunpack.c.l.b16 %v494
    %v562 = vunpack.c.l.b16 %v495
    %v563 = vunpack.c.l.b16 %v496
    %v564 = vunpack.c.l.b16 %v497
    %v565 = vunpack.c.l.b16 %v498
    %v566 = vunpack.c.l.b16 %v499
    %v567 = vunpack.c.l.b16 %v500
    %v568 = vunpack.c.l.b16 %v501
    %v569 = vunpack.c.l.b16 %v502
    %v570 = vunpack.c.l.b16 %v503
    %v571 = vunpack.c.l.b16 %v504
    %v572 = vunpack.c.l.b16 %v505
    %v573 = vunpack.c.l.b16 %v506
    %v574 = vunpack.c.l.b16 %v507
    %v575 = vunpack.c.l.b16 %v508
    %v576 = vunpack.c.l.b16 %v509
    %v577 = vunpack.c.l.b16 %v510
    %v578 = vunpack.c.l.b16 %v511
    %v579 = vunpack.c.l.b16 %v512
    %v580 = vunpack.c.l.b16 %v513
    %v581 = vunpack.c.l.b16 %v514
    %v582 = vunpack.c.l.b16 %v515
    %v583 = vunpack.c.l.b16 %v516
    %v584 = vunpack.c.l.b16 %v517
    %v585 = vunpack.c.l.b16 %v518
    %v586 = vunpack.c.l.b16 %v519
    %v587 = vunpack.c.l.b16 %v520
    %v588 = vunpack.c.l.b16 %v521
    %v589 = vpack.c.b16 %v558, %v557
    %v590 = vpack.c.b16 %v560, %v559
    %v591 = vpack.c.b16 %v562, %v561
    %v592 = vpack.c.b16 %v564, %v563
    %v593 = vpack.c.b16 %v566, %v565
    %v594 = vpack.c.b16 %v568, %v567
    %v595 = vpack.c.b16 %v570, %v569
    %v596 = vpack.c.b16 %v572, %v571
    %v597 = vpack.c.b16 %v574, %v573
    %v598 = vpack.c.b16 %v576, %v575
    %v599 = vpack.c.b16 %v578, %v577
    %v600 = vpack.c.b16 %v580, %v579
    %v601 = vpack.c.b16 %v582, %v581
    %v602 = vpack.c.b16 %v584, %v583
    %v603 = vpack.c.b16 %v586, %v585
    %v604 = vpack.c.b16 %v588, %v587
    %621 = vmatpush.bf16.msra.mxu0 %v596
    %622 = vmatpush.bf16.msra.mxu0 %v595
    %623 = vmatpush.bf16.msra.mxu0 %v594
    %624 = vmatpush.bf16.msra.mxu0 %v593
    %625 = vmatpush.bf16.msra.mxu0 %v592
    %626 = vmatpush.bf16.msra.mxu0 %v591
    %627 = vmatpush.bf16.msra.mxu0 %v590
    %628 = vmatpush.bf16.msra.mxu0 %v589
    %629 = vmatmul.bf16.gmra.mxu0 %v474
    %v630 = vpop.f32.mrf.mxu0
    %v631 = vadd.f32 %v524, %v630
    %v632 = vpop.f32.mrf.mxu0
    %v633 = vadd.f32 %v524, %v632
    %634 = vmatmul.bf16.gmra.mxu0 %v475
    %v635 = vpop.f32.mrf.mxu0
    %v636 = vadd.f32 %v524, %v635
    %v637 = vpop.f32.mrf.mxu0
    %v638 = vadd.f32 %v524, %v637
    %639 = vmatmul.bf16.gmra.mxu0 %v476
    %v640 = vpop.f32.mrf.mxu0
    %v641 = vadd.f32 %v524, %v640
    %v642 = vpop.f32.mrf.mxu0
    %v643 = vadd.f32 %v524, %v642
    %644 = vmatmul.bf16.gmra.mxu0 %v477
    %v645 = vpop.f32.mrf.mxu0
    %v646 = vadd.f32 %v524, %v645
    %v647 = vpop.f32.mrf.mxu0
    %v648 = vadd.f32 %v524, %v647
    %649 = vmatmul.bf16.gmra.mxu0 %v478
    %v650 = vpop.f32.mrf.mxu0
    %v651 = vadd.f32 %v524, %v650
    %v652 = vpop.f32.mrf.mxu0
    %v653 = vadd.f32 %v524, %v652
    %654 = vmatmul.bf16.gmra.mxu0 %v479
    %v655 = vpop.f32.mrf.mxu0
    %v656 = vadd.f32 %v524, %v655
    %v657 = vpop.f32.mrf.mxu0
    %v658 = vadd.f32 %v524, %v657
    %659 = vmatmul.bf16.gmra.mxu0 %v480
    %v660 = vpop.f32.mrf.mxu0
    %v661 = vadd.f32 %v524, %v660
    %v662 = vpop.f32.mrf.mxu0
    %v663 = vadd.f32 %v524, %v662
    %664 = vmatmul.bf16.gmra.mxu0 %v481
    %v665 = vpop.f32.mrf.mxu0
    %v666 = vadd.f32 %v524, %v665
    %v667 = vpop.f32.mrf.mxu0
    %v668 = vadd.f32 %v524, %v667
    %669 = vdwg.mxu0
    %670 = vmatpush.bf16.msra.mxu0 %v604
    %671 = vmatpush.bf16.msra.mxu0 %v603
    %672 = vmatpush.bf16.msra.mxu0 %v602
    %673 = vmatpush.bf16.msra.mxu0 %v601
    %674 = vmatpush.bf16.msra.mxu0 %v600
    %675 = vmatpush.bf16.msra.mxu0 %v599
    %676 = vmatpush.bf16.msra.mxu0 %v598
    %677 = vmatpush.bf16.msra.mxu0 %v597
    %678 = vmatmul.bf16.gmra.mxu0 %v157
    %v679 = vpop.f32.mrf.mxu0
    %v680 = vadd.f32 %v631, %v679
    %v681 = vpop.f32.mrf.mxu0
    %v682 = vadd.f32 %v633, %v681
    %683 = vmatmul.bf16.gmra.mxu0 %v158
    %v684 = vpop.f32.mrf.mxu0
    %v685 = vadd.f32 %v636, %v684
    %v686 = vpop.f32.mrf.mxu0
    %v687 = vadd.f32 %v638, %v686
    %688 = vmatmul.bf16.gmra.mxu0 %v159
    %v689 = vpop.f32.mrf.mxu0
    %v690 = vadd.f32 %v641, %v689
    %v691 = vpop.f32.mrf.mxu0
    %v692 = vadd.f32 %v643, %v691
    %693 = vmatmul.bf16.gmra.mxu0 %v160
    %v694 = vpop.f32.mrf.mxu0
    %v695 = vadd.f32 %v646, %v694
    %v696 = vpop.f32.mrf.mxu0
    %v697 = vadd.f32 %v648, %v696
    %698 = vmatmul.bf16.gmra.mxu0 %v161
    %v699 = vpop.f32.mrf.mxu0
    %v700 = vadd.f32 %v651, %v699
    %v701 = vpop.f32.mrf.mxu0
    %v702 = vadd.f32 %v653, %v701
    %703 = vmatmul.bf16.gmra.mxu0 %v162
    %v704 = vpop.f32.mrf.mxu0
    %v705 = vadd.f32 %v656, %v704
    %v706 = vpop.f32.mrf.mxu0
    %v707 = vadd.f32 %v658, %v706
    %708 = vmatmul.bf16.gmra.mxu0 %v163
    %v709 = vpop.f32.mrf.mxu0
    %v710 = vadd.f32 %v661, %v709
    %v711 = vpop.f32.mrf.mxu0
    %v712 = vadd.f32 %v663, %v711
    %713 = vmatmul.bf16.gmra.mxu0 %v164
    %v714 = vpop.f32.mrf.mxu0
    %v715 = vadd.f32 %v666, %v714
    %v716 = vpop.f32.mrf.mxu0
    %v717 = vadd.f32 %v668, %v716
    %718 = vdwg.mxu0
    %v719 = vsub.f32 0.0, %v680
    %v720 = vsub.f32 0.0, %v682
    %v721 = vsub.f32 0.0, %v685
    %v722 = vsub.f32 0.0, %v687
    %v723 = vsub.f32 0.0, %v690
    %v724 = vsub.f32 0.0, %v692
    %v725 = vsub.f32 0.0, %v695
    %v726 = vsub.f32 0.0, %v697
    %v727 = vsub.f32 0.0, %v700
    %v728 = vsub.f32 0.0, %v702
    %v729 = vsub.f32 0.0, %v705
    %v730 = vsub.f32 0.0, %v707
    %v731 = vsub.f32 0.0, %v710
    %v732 = vsub.f32 0.0, %v712
    %v733 = vsub.f32 0.0, %v715
    %v734 = vsub.f32 0.0, %v717
    %v735 = vmul.f32 %v719, 1.442695
    %v736 = vpow.pop %v735
    %v737 = vmul.f32 %v720, 1.442695
    %v738 = vpow.pop %v737
    %v739 = vmul.f32 %v721, 1.442695
    %v740 = vpow.pop %v739
    %v741 = vmul.f32 %v722, 1.442695
    %v742 = vpow.pop %v741
    %v743 = vmul.f32 %v723, 1.442695
    %v744 = vpow.pop %v743
    %v745 = vmul.f32 %v724, 1.442695
    %v746 = vpow.pop %v745
    %v747 = vmul.f32 %v725, 1.442695
    %v748 = vpow.pop %v747
    %v749 = vmul.f32 %v726, 1.442695
    %v750 = vpow.pop %v749
    %v751 = vmul.f32 %v727, 1.442695
    %v752 = vpow.pop %v751
    %v753 = vmul.f32 %v728, 1.442695
    %v754 = vpow.pop %v753
    %v755 = vmul.f32 %v729, 1.442695
    %v756 = vpow.pop %v755
    %v757 = vmul.f32 %v730, 1.442695
    %v758 = vpow.pop %v757
    %v759 = vmul.f32 %v731, 1.442695
    %v760 = vpow.pop %v759
    %v761 = vmul.f32 %v732, 1.442695
    %v762 = vpow.pop %v761
    %v763 = vmul.f32 %v733, 1.442695
    %v764 = vpow.pop %v763
    %v765 = vmul.f32 %v734, 1.442695
    %v766 = vpow.pop %v765
    %v767 = vadd.f32 %v736, 1.0
    %v768 = vadd.f32 %v738, 1.0
    %v769 = vadd.f32 %v740, 1.0
    %v770 = vadd.f32 %v742, 1.0
    %v771 = vadd.f32 %v744, 1.0
    %v772 = vadd.f32 %v746, 1.0
    %v773 = vadd.f32 %v748, 1.0
    %v774 = vadd.f32 %v750, 1.0
    %v775 = vadd.f32 %v752, 1.0
    %v776 = vadd.f32 %v754, 1.0
    %v777 = vadd.f32 %v756, 1.0
    %v778 = vadd.f32 %v758, 1.0
    %v779 = vadd.f32 %v760, 1.0
    %v780 = vadd.f32 %v762, 1.0
    %v781 = vadd.f32 %v764, 1.0
    %v782 = vadd.f32 %v766, 1.0
    %v783 = vrcp.pop %v767
    %v784 = vrcp.pop %v768
    %v785 = vrcp.pop %v769
    %v786 = vrcp.pop %v770
    %v787 = vrcp.pop %v771
    %v788 = vrcp.pop %v772
    %v789 = vrcp.pop %v773
    %v790 = vrcp.pop %v774
    %v791 = vrcp.pop %v775
    %v792 = vrcp.pop %v776
    %v793 = vrcp.pop %v777
    %v794 = vrcp.pop %v778
    %v795 = vrcp.pop %v779
    %v796 = vrcp.pop %v780
    %v797 = vrcp.pop %v781
    %v798 = vrcp.pop %v782
    %799 = vst [vmem:[#allocation10] sm:$0xff] %v783
    %800 = vst [vmem:[#allocation10 + $0x8] sm:$0xff] %v784
    %801 = vst [vmem:[#allocation10 + $0x10] sm:$0xff] %v785
    %802 = vst [vmem:[#allocation10 + $0x18] sm:$0xff] %v786
    %803 = vst [vmem:[#allocation10 + $0x20] sm:$0xff] %v787
    %804 = vst [vmem:[#allocation10 + $0x28] sm:$0xff] %v788
    %805 = vst [vmem:[#allocation10 + $0x30] sm:$0xff] %v789
    %806 = vst [vmem:[#allocation10 + $0x38] sm:$0xff] %v790
    %807 = vst [vmem:[#allocation10 + $0x40] sm:$0xff] %v791
    %808 = vst [vmem:[#allocation10 + $0x48] sm:$0xff] %v792
    %809 = vst [vmem:[#allocation10 + $0x50] sm:$0xff] %v793
    %810 = vst [vmem:[#allocation10 + $0x58] sm:$0xff] %v794
    %811 = vst [vmem:[#allocation10 + $0x60] sm:$0xff] %v795
    %812 = vst [vmem:[#allocation10 + $0x68] sm:$0xff] %v796
    %813 = vst [vmem:[#allocation10 + $0x70] sm:$0xff] %v797
    %814 = vst [vmem:[#allocation10 + $0x78] sm:$0xff] %v798
    // Predicated region
    $region46: #{tpu_custom_call.1} parent=1 // pred_check
      _
    $region47: #{tpu_custom_call.1} parent=1 // pred_check_branch
      %816 = sbr.rel (0) target = $region49
    $region48: #{tpu_custom_call.1} parent=1 // pred_region
      %818 = vsyncadd [#allocation4], 0
      %s819 = sshll.u32 [#allocation10], 4
      %s820 = int_to_ptr.vmem [resolvable:$true] %s819
      %s821 = sshll.u32 %s7, 4
      %s822 = int_to_ptr.hbm [resolvable:$true] %s821
      %827 = dma.vmem_to_hbm [thread:$0]  %s820, 2048, %s822, [#allocation4], 128, 128, 8
    $region49: #{tpu_custom_call.1} parent=1 // pred_fallthru
      _
    // Predicated region
    $region50: #{tpu_custom_call.1} parent=1 // pred_check
      _
    $region51: #{tpu_custom_call.1} parent=1 // pred_check_branch
      %829 = sbr.rel (0) target = $region53
    $region52: #{tpu_custom_call.1} parent=1 // pred_region
      %831 = dma.done [#allocation4], 2048
    $region53: #{tpu_custom_call.1} parent=1 // pred_fallthru
      _
    %832 = vsyncpa [#allocation3], 1
    %833 = vsyncpa [#allocation6], 1
    %834 = vsyncpa [#allocation9], 1
    %835 = vsyncpa [#allocation4], 1

// kernel: tpu_custom_call.1
$region0: #{tpu_custom_call.1}
  #allocation0 [shape = 'u32[]', space=smem, size = 0x4, offset = 0x4, fixed_abs, tag = 'smem constant byte address 0x4 - core index']
  #allocation1 [shape = 'u32[72,128]{1,0:T(1,128)}', space=vmem, size = 0x9000, scoped, tag = 'internal scratch']
  %s0 = inlined_call_operand.hbm [shape: bf16[128,128], index: 0, kind: input, shape index: {}]
  %s1 = inlined_call_operand.hbm [shape: bf16[128,128], index: 1, kind: input, shape index: {}]
  %s2 = inlined_call_operand.vmem [shape: bf16[1,128], index: 2, kind: input, shape index: {}]
  %s3 = inlined_call_operand.hbm [shape: bf16[128,128], index: 3, kind: input, shape index: {}]
  %s4 = inlined_call_operand.vmem [shape: bf16[1,128], index: 4, kind: input, shape index: {}]
  %s5 = inlined_call_operand.hbm [shape: bf16[256,128], index: 5, kind: input, shape index: {}]
  %s6 = inlined_call_operand.vmem [shape: bf16[1,128], index: 6, kind: input, shape index: {}]
  %s7 = inlined_call_operand.hbm [shape: f32[128,128], index: 7, kind: output, shape index: {}]
  %s8 = sld [smem:[#allocation0]]
  $region54: #{tpu_custom_call.1} parent=0
    _
  %s10 = ssub.s32 1, %s8
  %s11 = scalar_select 0, %s10, %s8
  $region1: #{tpu_custom_call.1} parent=0
    #allocation2 [shape = 'u8[32768]{0}', space=vmem, size = 0x8000, scoped, tag = 'input window, operand 0, single buffered']
    #allocation3 [shape = 's32[1]{0}', space=sflag, size = 0x4, scoped, tag = 'scoped memory for tpu_custom_call.1']
    #allocation4 [shape = 's32[1]{0}', space=sflag, size = 0x4, scoped, tag = 'scoped memory for tpu_custom_call.1']
    #allocation5 [shape = 'u8[32768]{0}', space=vmem, size = 0x8000, scoped, tag = 'input window, operand 1, single buffered']
    #allocation6 [shape = 's32[1]{0}', space=sflag, size = 0x4, scoped, tag = 'scoped memory for tpu_custom_call.1']
    #allocation7 [shape = 'u8[32768]{0}', space=vmem, size = 0x8000, scoped, tag = 'input window, operand 3, single buffered']
    #allocation8 [shape = 'u8[65536]{0}', space=vmem, size = 0x10000, scoped, tag = 'input window, operand 5, single buffered']
    #allocation9 [shape = 's32[1]{0}', space=sflag, size = 0x4, scoped, tag = 'scoped memory for tpu_custom_call.1']
    #allocation10 [shape = 'u8[65536]{0}', space=vmem, size = 0x10000, scoped, tag = 'output window, operand 0, single buffered']
    %12 = vsyncpa [#allocation3], 0
    %13 = vsyncpa [#allocation6], 0
    %14 = vsyncpa [#allocation9], 0
    %15 = vsyncpa [#allocation4], 0
    // Predicated region
    $region2: #{tpu_custom_call.1} parent=1 // pred_check
      _
    $region3: #{tpu_custom_call.1} parent=1 // pred_check_branch
      %17 = sbr.rel (0) target = $region5
    $region4: #{tpu_custom_call.1} parent=1 // pred_region
      %19 = vsyncadd [#allocation3], 0
      %s20 = sshll.u32 %s0, 4
      %s21 = int_to_ptr.hbm [resolvable:$true] %s20
      %s22 = sshll.u32 [#allocation2], 4
      %s23 = int_to_ptr.vmem [resolvable:$true] %s22
      %28 = dma.hbm_to_vmem [thread:$0]  %s21, 1024, %s23, [#allocation3], 64, 64, 4
    $region5: #{tpu_custom_call.1} parent=1 // pred_fallthru
      _
    // Predicated region
    $region6: #{tpu_custom_call.1} parent=1 // pred_check
      _
    $region7: #{tpu_custom_call.1} parent=1 // pred_check_branch
      %30 = sbr.rel (0) target = $region9
    $region8: #{tpu_custom_call.1} parent=1 // pred_region
      %32 = vsyncadd [#allocation6], 0
      %s33 = sshll.u32 %s1, 4
      %s34 = int_to_ptr.hbm [resolvable:$true] %s33
      %s35 = sshll.u32 [#allocation5], 4
      %s36 = int_to_ptr.vmem [resolvable:$true] %s35
      %41 = dma.hbm_to_vmem [thread:$0]  %s34, 1024, %s36, [#allocation6], 64, 64, 4
    $region9: #{tpu_custom_call.1} parent=1 // pred_fallthru
      _
    // Predicated region
    $region10: #{tpu_custom_call.1} parent=1 // pred_check
      _
    $region11: #{tpu_custom_call.1} parent=1 // pred_check_branch
      %43 = sbr.rel (0) target = $region13
    $region12: #{tpu_custom_call.1} parent=1 // pred_region
      _
    $region13: #{tpu_custom_call.1} parent=1 // pred_fallthru
      _
    // Predicated region
    $region14: #{tpu_custom_call.1} parent=1 // pred_check
      _
    $region15: #{tpu_custom_call.1} parent=1 // pred_check_branch
      %45 = sbr.rel (0) target = $region17
    $region16: #{tpu_custom_call.1} parent=1 // pred_region
      %47 = vsyncadd [#allocation6], 0
      %s48 = sshll.u32 %s3, 4
      %s49 = int_to_ptr.hbm [resolvable:$true] %s48
      %s50 = sshll.u32 [#allocation7], 4
      %s51 = int_to_ptr.vmem [resolvable:$true] %s50
      %56 = dma.hbm_to_vmem [thread:$0]  %s49, 1024, %s51, [#allocation6], 64, 64, 4
    $region17: #{tpu_custom_call.1} parent=1 // pred_fallthru
      _
    // Predicated region
    $region18: #{tpu_custom_call.1} parent=1 // pred_check
      _
    $region19: #{tpu_custom_call.1} parent=1 // pred_check_branch
      %58 = sbr.rel (0) target = $region21
    $region20: #{tpu_custom_call.1} parent=1 // pred_region
      _
    $region21: #{tpu_custom_call.1} parent=1 // pred_fallthru
      _
    // Predicated region
    $region22: #{tpu_custom_call.1} parent=1 // pred_check
      _
    $region23: #{tpu_custom_call.1} parent=1 // pred_check_branch
      %60 = sbr.rel (0) target = $region25
    $region24: #{tpu_custom_call.1} parent=1 // pred_region
      %62 = vsyncadd [#allocation9], 0
      %s63 = sshll.u32 %s5, 4
      %s64 = int_to_ptr.hbm [resolvable:$true] %s63
      %s65 = sshll.u32 [#allocation8], 4
      %s66 = int_to_ptr.vmem [resolvable:$true] %s65
      %71 = dma.hbm_to_vmem [thread:$0]  %s64, 2048, %s66, [#allocation9], 64, 64, 4
    $region25: #{tpu_custom_call.1} parent=1 // pred_fallthru
      _
    // Predicated region
    $region26: #{tpu_custom_call.1} parent=1 // pred_check
      _
    $region27: #{tpu_custom_call.1} parent=1 // pred_check_branch
      %73 = sbr.rel (0) target = $region29
    $region28: #{tpu_custom_call.1} parent=1 // pred_region
      _
    $region29: #{tpu_custom_call.1} parent=1 // pred_fallthru
      _
    // Predicated region
    $region30: #{tpu_custom_call.1} parent=1 // pred_check
      _
    $region31: #{tpu_custom_call.1} parent=1 // pred_check_branch
      %75 = sbr.rel (0) target = $region33
    $region32: #{tpu_custom_call.1} parent=1 // pred_region
      %77 = dma.done [#allocation3], 1024
    $region33: #{tpu_custom_call.1} parent=1 // pred_fallthru
      _
    // Predicated region
    $region34: #{tpu_custom_call.1} parent=1 // pred_check
      _
    $region35: #{tpu_custom_call.1} parent=1 // pred_check_branch
      %79 = sbr.rel (0) target = $region37
    $region36: #{tpu_custom_call.1} parent=1 // pred_region
      %81 = dma.done [#allocation6], 1024
    $region37: #{tpu_custom_call.1} parent=1 // pred_fallthru
      _
    // Predicated region
    $region38: #{tpu_custom_call.1} parent=1 // pred_check
      _
    $region39: #{tpu_custom_call.1} parent=1 // pred_check_branch
      %83 = sbr.rel (0) target = $region41
    $region40: #{tpu_custom_call.1} parent=1 // pred_region
      %85 = dma.done [#allocation6], 1024
    $region41: #{tpu_custom_call.1} parent=1 // pred_fallthru
      _
    // Predicated region
    $region42: #{tpu_custom_call.1} parent=1 // pred_check
      _
    $region43: #{tpu_custom_call.1} parent=1 // pred_check_branch
      %87 = sbr.rel (0) target = $region45
    $region44: #{tpu_custom_call.1} parent=1 // pred_region
      %89 = dma.done [#allocation9], 2048
    $region45: #{tpu_custom_call.1} parent=1 // pred_fallthru
      _
    %v90 = vld [vmem:[#allocation2] sm:$0xf]
    %v91 = vld [vmem:[#allocation2 + $0x4] sm:$0xf]
    %v92 = vld [vmem:[#allocation2 + $0x8] sm:$0xf]
    %v93 = vld [vmem:[#allocation2 + $0xc] sm:$0xf]
    %v94 = vld [vmem:[#allocation2 + $0x10] sm:$0xf]
    %v95 = vld [vmem:[#allocation2 + $0x14] sm:$0xf]
    %v96 = vld [vmem:[#allocation2 + $0x18] sm:$0xf]
    %v97 = vld [vmem:[#allocation2 + $0x1c] sm:$0xf]
    %v98 = vld [vmem:[#allocation2 + $0x20] sm:$0xf]
    %v99 = vld [vmem:[#allocation2 + $0x24] sm:$0xf]
    %v100 = vld [vmem:[#allocation2 + $0x28] sm:$0xf]
    %v101 = vld [vmem:[#allocation2 + $0x2c] sm:$0xf]
    %v102 = vld [vmem:[#allocation2 + $0x30] sm:$0xf]
    %v103 = vld [vmem:[#allocation2 + $0x34] sm:$0xf]
    %v104 = vld [vmem:[#allocation2 + $0x38] sm:$0xf]
    %v105 = vld [vmem:[#allocation2 + $0x3c] sm:$0xf]
    %v106 = vld [vmem:[#allocation5] sm:$0xf]
    %v107 = vld [vmem:[#allocation5 + $0x4] sm:$0xf]
    %v108 = vld [vmem:[#allocation5 + $0x8] sm:$0xf]
    %v109 = vld [vmem:[#allocation5 + $0xc] sm:$0xf]
    %v110 = vld [vmem:[#allocation5 + $0x10] sm:$0xf]
    %v111 = vld [vmem:[#allocation5 + $0x14] sm:$0xf]
    %v112 = vld [vmem:[#allocation5 + $0x18] sm:$0xf]
    %v113 = vld [vmem:[#allocation5 + $0x1c] sm:$0xf]
    %v114 = vld [vmem:[#allocation5 + $0x20] sm:$0xf]
    %v115 = vld [vmem:[#allocation5 + $0x24] sm:$0xf]
    %v116 = vld [vmem:[#allocation5 + $0x28] sm:$0xf]
    %v117 = vld [vmem:[#allocation5 + $0x2c] sm:$0xf]
    %v118 = vld [vmem:[#allocation5 + $0x30] sm:$0xf]
    %v119 = vld [vmem:[#allocation5 + $0x34] sm:$0xf]
    %v120 = vld [vmem:[#allocation5 + $0x38] sm:$0xf]
    %v121 = vld [vmem:[#allocation5 + $0x3c] sm:$0xf]
    %v122 = vld [vmem:[%s2] sm:$0x1]
    %v123 = vunpack.c.l.bf16 %v122
    %v124 = vperm.slane %v123, 0
    %v141 = vunpack.c.l.b16 %v90
    %v142 = vunpack.c.l.b16 %v91
    %v143 = vunpack.c.l.b16 %v92
    %v144 = vunpack.c.l.b16 %v93
    %v145 = vunpack.c.l.b16 %v94
    %v146 = vunpack.c.l.b16 %v95
    %v147 = vunpack.c.l.b16 %v96
    %v148 = vunpack.c.l.b16 %v97
    %v149 = vunpack.c.l.b16 %v98
    %v150 = vunpack.c.l.b16 %v99
    %v151 = vunpack.c.l.b16 %v100
    %v152 = vunpack.c.l.b16 %v101
    %v153 = vunpack.c.l.b16 %v102
    %v154 = vunpack.c.l.b16 %v103
    %v155 = vunpack.c.l.b16 %v104
    %v156 = vunpack.c.l.b16 %v105
    %v157 = vpack.c.b16 %v142, %v141
    %v158 = vpack.c.b16 %v144, %v143
    %v159 = vpack.c.b16 %v146, %v145
    %v160 = vpack.c.b16 %v148, %v147
    %v161 = vpack.c.b16 %v150, %v149
    %v162 = vpack.c.b16 %v152, %v151
    %v163 = vpack.c.b16 %v154, %v153
    %v164 = vpack.c.b16 %v156, %v155
    %v189 = vunpack.c.l.b16 %v106
    %v190 = vunpack.c.l.b16 %v107
    %v191 = vunpack.c.l.b16 %v108
    %v192 = vunpack.c.l.b16 %v109
    %v193 = vunpack.c.l.b16 %v110
    %v194 = vunpack.c.l.b16 %v111
    %v195 = vunpack.c.l.b16 %v112
    %v196 = vunpack.c.l.b16 %v113
    %v197 = vunpack.c.l.b16 %v114
    %v198 = vunpack.c.l.b16 %v115
    %v199 = vunpack.c.l.b16 %v116
    %v200 = vunpack.c.l.b16 %v117
    %v201 = vunpack.c.l.b16 %v118
    %v202 = vunpack.c.l.b16 %v119
    %v203 = vunpack.c.l.b16 %v120
    %v204 = vunpack.c.l.b16 %v121
    %v205 = vpack.c.b16 %v190, %v189
    %v206 = vpack.c.b16 %v192, %v191
    %v207 = vpack.c.b16 %v194, %v193
    %v208 = vpack.c.b16 %v196, %v195
    %v209 = vpack.c.b16 %v198, %v197
    %v210 = vpack.c.b16 %v200, %v199
    %v211 = vpack.c.b16 %v202, %v201
    %v212 = vpack.c.b16 %v204, %v203
    %221 = vmatpush.bf16.msra.mxu0 %v212
    %222 = vmatpush.bf16.msra.mxu0 %v211
    %223 = vmatpush.bf16.msra.mxu0 %v210
    %224 = vmatpush.bf16.msra.mxu0 %v209
    %225 = vmatpush.bf16.msra.mxu0 %v208
    %226 = vmatpush.bf16.msra.mxu0 %v207
    %227 = vmatpush.bf16.msra.mxu0 %v206
    %228 = vmatpush.bf16.msra.mxu0 %v205
    %229 = vmatmul.bf16.gmra.mxu0 %v157
    %v230 = vpop.f32.mrf.mxu0
    %v231 = vadd.f32 %v124, %v230
    %v232 = vpop.f32.mrf.mxu0
    %v233 = vadd.f32 %v124, %v232
    %234 = vmatmul.bf16.gmra.mxu0 %v158
    %v235 = vpop.f32.mrf.mxu0
    %v236 = vadd.f32 %v124, %v235
    %v237 = vpop.f32.mrf.mxu0
    %v238 = vadd.f32 %v124, %v237
    %239 = vmatmul.bf16.gmra.mxu0 %v159
    %v240 = vpop.f32.mrf.mxu0
    %v241 = vadd.f32 %v124, %v240
    %v242 = vpop.f32.mrf.mxu0
    %v243 = vadd.f32 %v124, %v242
    %244 = vmatmul.bf16.gmra.mxu0 %v160
    %v245 = vpop.f32.mrf.mxu0
    %v246 = vadd.f32 %v124, %v245
    %v247 = vpop.f32.mrf.mxu0
    %v248 = vadd.f32 %v124, %v247
    %249 = vmatmul.bf16.gmra.mxu0 %v161
    %v250 = vpop.f32.mrf.mxu0
    %v251 = vadd.f32 %v124, %v250
    %v252 = vpop.f32.mrf.mxu0
    %v253 = vadd.f32 %v124, %v252
    %254 = vmatmul.bf16.gmra.mxu0 %v162
    %v255 = vpop.f32.mrf.mxu0
    %v256 = vadd.f32 %v124, %v255
    %v257 = vpop.f32.mrf.mxu0
    %v258 = vadd.f32 %v124, %v257
    %259 = vmatmul.bf16.gmra.mxu0 %v163
    %v260 = vpop.f32.mrf.mxu0
    %v261 = vadd.f32 %v124, %v260
    %v262 = vpop.f32.mrf.mxu0
    %v263 = vadd.f32 %v124, %v262
    %264 = vmatmul.bf16.gmra.mxu0 %v164
    %v265 = vpop.f32.mrf.mxu0
    %v266 = vadd.f32 %v124, %v265
    %v267 = vpop.f32.mrf.mxu0
    %v268 = vadd.f32 %v124, %v267
    %269 = vdwg.mxu0
    %v270 = vmax.f32 %v231, 0.0
    %v271 = vmax.f32 %v233, 0.0
    %v272 = vmax.f32 %v236, 0.0
    %v273 = vmax.f32 %v238, 0.0
    %v274 = vmax.f32 %v241, 0.0
    %v275 = vmax.f32 %v243, 0.0
    %v276 = vmax.f32 %v246, 0.0
    %v277 = vmax.f32 %v248, 0.0
    %v278 = vmax.f32 %v251, 0.0
    %v279 = vmax.f32 %v253, 0.0
    %v280 = vmax.f32 %v256, 0.0
    %v281 = vmax.f32 %v258, 0.0
    %v282 = vmax.f32 %v261, 0.0
    %v283 = vmax.f32 %v263, 0.0
    %v284 = vmax.f32 %v266, 0.0
    %v285 = vmax.f32 %v268, 0.0
    %v286 = vpack.c.bf16 %v271, %v270
    %v287 = vpack.c.bf16 %v273, %v272
    %v288 = vpack.c.bf16 %v275, %v274
    %v289 = vpack.c.bf16 %v277, %v276
    %v290 = vpack.c.bf16 %v279, %v278
    %v291 = vpack.c.bf16 %v281, %v280
    %v292 = vpack.c.bf16 %v283, %v282
    %v293 = vpack.c.bf16 %v285, %v284
    %v294 = vld [vmem:[#allocation7] sm:$0xf]
    %v295 = vld [vmem:[#allocation7 + $0x4] sm:$0xf]
    %v296 = vld [vmem:[#allocation7 + $0x8] sm:$0xf]
    %v297 = vld [vmem:[#allocation7 + $0xc] sm:$0xf]
    %v298 = vld [vmem:[#allocation7 + $0x10] sm:$0xf]
    %v299 = vld [vmem:[#allocation7 + $0x14] sm:$0xf]
    %v300 = vld [vmem:[#allocation7 + $0x18] sm:$0xf]
    %v301 = vld [vmem:[#allocation7 + $0x1c] sm:$0xf]
    %v302 = vld [vmem:[#allocation7 + $0x20] sm:$0xf]
    %v303 = vld [vmem:[#allocation7 + $0x24] sm:$0xf]
    %v304 = vld [vmem:[#allocation7 + $0x28] sm:$0xf]
    %v305 = vld [vmem:[#allocation7 + $0x2c] sm:$0xf]
    %v306 = vld [vmem:[#allocation7 + $0x30] sm:$0xf]
    %v307 = vld [vmem:[#allocation7 + $0x34] sm:$0xf]
    %v308 = vld [vmem:[#allocation7 + $0x38] sm:$0xf]
    %v309 = vld [vmem:[#allocation7 + $0x3c] sm:$0xf]
    %v310 = vld [vmem:[%s4] sm:$0x1]
    %v311 = vunpack.c.l.bf16 %v310
    %v312 = vperm.slane %v311, 0
    %v329 = vunpack.c.l.b16 %v294
    %v330 = vunpack.c.l.b16 %v295
    %v331 = vunpack.c.l.b16 %v296
    %v332 = vunpack.c.l.b16 %v297
    %v333 = vunpack.c.l.b16 %v298
    %v334 = vunpack.c.l.b16 %v299
    %v335 = vunpack.c.l.b16 %v300
    %v336 = vunpack.c.l.b16 %v301
    %v337 = vunpack.c.l.b16 %v302
    %v338 = vunpack.c.l.b16 %v303
    %v339 = vunpack.c.l.b16 %v304
    %v340 = vunpack.c.l.b16 %v305
    %v341 = vunpack.c.l.b16 %v306
    %v342 = vunpack.c.l.b16 %v307
    %v343 = vunpack.c.l.b16 %v308
    %v344 = vunpack.c.l.b16 %v309
    %v345 = vpack.c.b16 %v330, %v329
    %v346 = vpack.c.b16 %v332, %v331
    %v347 = vpack.c.b16 %v334, %v333
    %v348 = vpack.c.b16 %v336, %v335
    %v349 = vpack.c.b16 %v338, %v337
    %v350 = vpack.c.b16 %v340, %v339
    %v351 = vpack.c.b16 %v342, %v341
    %v352 = vpack.c.b16 %v344, %v343
    %361 = vmatpush.bf16.msra.mxu0 %v352
    %362 = vmatpush.bf16.msra.mxu0 %v351
    %363 = vmatpush.bf16.msra.mxu0 %v350
    %364 = vmatpush.bf16.msra.mxu0 %v349
    %365 = vmatpush.bf16.msra.mxu0 %v348
    %366 = vmatpush.bf16.msra.mxu0 %v347
    %367 = vmatpush.bf16.msra.mxu0 %v346
    %368 = vmatpush.bf16.msra.mxu0 %v345
    %369 = vmatmul.bf16.gmra.mxu0 %v286
    %v370 = vpop.f32.mrf.mxu0
    %v371 = vadd.f32 %v312, %v370
    %v372 = vpop.f32.mrf.mxu0
    %v373 = vadd.f32 %v312, %v372
    %374 = vmatmul.bf16.gmra.mxu0 %v287
    %v375 = vpop.f32.mrf.mxu0
    %v376 = vadd.f32 %v312, %v375
    %v377 = vpop.f32.mrf.mxu0
    %v378 = vadd.f32 %v312, %v377
    %379 = vmatmul.bf16.gmra.mxu0 %v288
    %v380 = vpop.f32.mrf.mxu0
    %v381 = vadd.f32 %v312, %v380
    %v382 = vpop.f32.mrf.mxu0
    %v383 = vadd.f32 %v312, %v382
    %384 = vmatmul.bf16.gmra.mxu0 %v289
    %v385 = vpop.f32.mrf.mxu0
    %v386 = vadd.f32 %v312, %v385
    %v387 = vpop.f32.mrf.mxu0
    %v388 = vadd.f32 %v312, %v387
    %389 = vmatmul.bf16.gmra.mxu0 %v290
    %v390 = vpop.f32.mrf.mxu0
    %v391 = vadd.f32 %v312, %v390
    %v392 = vpop.f32.mrf.mxu0
    %v393 = vadd.f32 %v312, %v392
    %394 = vmatmul.bf16.gmra.mxu0 %v291
    %v395 = vpop.f32.mrf.mxu0
    %v396 = vadd.f32 %v312, %v395
    %v397 = vpop.f32.mrf.mxu0
    %v398 = vadd.f32 %v312, %v397
    %399 = vmatmul.bf16.gmra.mxu0 %v292
    %v400 = vpop.f32.mrf.mxu0
    %v401 = vadd.f32 %v312, %v400
    %v402 = vpop.f32.mrf.mxu0
    %v403 = vadd.f32 %v312, %v402
    %404 = vmatmul.bf16.gmra.mxu0 %v293
    %v405 = vpop.f32.mrf.mxu0
    %v406 = vadd.f32 %v312, %v405
    %v407 = vpop.f32.mrf.mxu0
    %v408 = vadd.f32 %v312, %v407
    %409 = vdwg.mxu0
    %v410 = vmax.f32 %v371, 0.0
    %v411 = vmax.f32 %v373, 0.0
    %v412 = vmax.f32 %v376, 0.0
    %v413 = vmax.f32 %v378, 0.0
    %v414 = vmax.f32 %v381, 0.0
    %v415 = vmax.f32 %v383, 0.0
    %v416 = vmax.f32 %v386, 0.0
    %v417 = vmax.f32 %v388, 0.0
    %v418 = vmax.f32 %v391, 0.0
    %v419 = vmax.f32 %v393, 0.0
    %v420 = vmax.f32 %v396, 0.0
    %v421 = vmax.f32 %v398, 0.0
    %v422 = vmax.f32 %v401, 0.0
    %v423 = vmax.f32 %v403, 0.0
    %v424 = vmax.f32 %v406, 0.0
    %v425 = vmax.f32 %v408, 0.0
    %v426 = vpack.c.bf16 %v410, %v410
    %v427 = vpack.c.bf16 %v411, %v411
    %v428 = vpack.c.bf16 %v412, %v412
    %v429 = vpack.c.bf16 %v413, %v413
    %v430 = vpack.c.bf16 %v414, %v414
    %v431 = vpack.c.bf16 %v415, %v415
    %v432 = vpack.c.bf16 %v416, %v416
    %v433 = vpack.c.bf16 %v417, %v417
    %v434 = vpack.c.bf16 %v418, %v418
    %v435 = vpack.c.bf16 %v419, %v419
    %v436 = vpack.c.bf16 %v420, %v420
    %v437 = vpack.c.bf16 %v421, %v421
    %v438 = vpack.c.bf16 %v422, %v422
    %v439 = vpack.c.bf16 %v423, %v423
    %v440 = vpack.c.bf16 %v424, %v424
    %v441 = vpack.c.bf16 %v425, %v425
    %v458 = vunpack.c.l.b16 %v426
    %v459 = vunpack.c.l.b16 %v427
    %v460 = vunpack.c.l.b16 %v428
    %v461 = vunpack.c.l.b16 %v429
    %v462 = vunpack.c.l.b16 %v430
    %v463 = vunpack.c.l.b16 %v431
    %v464 = vunpack.c.l.b16 %v432
    %v465 = vunpack.c.l.b16 %v433
    %v466 = vunpack.c.l.b16 %v434
    %v467 = vunpack.c.l.b16 %v435
    %v468 = vunpack.c.l.b16 %v436
    %v469 = vunpack.c.l.b16 %v437
    %v470 = vunpack.c.l.b16 %v438
    %v471 = vunpack.c.l.b16 %v439
    %v472 = vunpack.c.l.b16 %v440
    %v473 = vunpack.c.l.b16 %v441
    %v474 = vpack.c.b16 %v459, %v458
    %v475 = vpack.c.b16 %v461, %v460
    %v476 = vpack.c.b16 %v463, %v462
    %v477 = vpack.c.b16 %v465, %v464
    %v478 = vpack.c.b16 %v467, %v466
    %v479 = vpack.c.b16 %v469, %v468
    %v480 = vpack.c.b16 %v471, %v470
    %v481 = vpack.c.b16 %v473, %v472
    %v490 = vld [vmem:[#allocation8] sm:$0xf]
    %v491 = vld [vmem:[#allocation8 + $0x4] sm:$0xf]
    %v492 = vld [vmem:[#allocation8 + $0x8] sm:$0xf]
    %v493 = vld [vmem:[#allocation8 + $0xc] sm:$0xf]
    %v494 = vld [vmem:[#allocation8 + $0x10] sm:$0xf]
    %v495 = vld [vmem:[#allocation8 + $0x14] sm:$0xf]
    %v496 = vld [vmem:[#allocation8 + $0x18] sm:$0xf]
    %v497 = vld [vmem:[#allocation8 + $0x1c] sm:$0xf]
    %v498 = vld [vmem:[#allocation8 + $0x20] sm:$0xf]
    %v499 = vld [vmem:[#allocation8 + $0x24] sm:$0xf]
    %v500 = vld [vmem:[#allocation8 + $0x28] sm:$0xf]
    %v501 = vld [vmem:[#allocation8 + $0x2c] sm:$0xf]
    %v502 = vld [vmem:[#allocation8 + $0x30] sm:$0xf]
    %v503 = vld [vmem:[#allocation8 + $0x34] sm:$0xf]
    %v504 = vld [vmem:[#allocation8 + $0x38] sm:$0xf]
    %v505 = vld [vmem:[#allocation8 + $0x3c] sm:$0xf]
    %v506 = vld [vmem:[#allocation8 + $0x40] sm:$0xf]
    %v507 = vld [vmem:[#allocation8 + $0x44] sm:$0xf]
    %v508 = vld [vmem:[#allocation8 + $0x48] sm:$0xf]
    %v509 = vld [vmem:[#allocation8 + $0x4c] sm:$0xf]
    %v510 = vld [vmem:[#allocation8 + $0x50] sm:$0xf]
    %v511 = vld [vmem:[#allocation8 + $0x54] sm:$0xf]
    %v512 = vld [vmem:[#allocation8 + $0x58] sm:$0xf]
    %v513 = vld [vmem:[#allocation8 + $0x5c] sm:$0xf]
    %v514 = vld [vmem:[#allocation8 + $0x60] sm:$0xf]
    %v515 = vld [vmem:[#allocation8 + $0x64] sm:$0xf]
    %v516 = vld [vmem:[#allocation8 + $0x68] sm:$0xf]
    %v517 = vld [vmem:[#allocation8 + $0x6c] sm:$0xf]
    %v518 = vld [vmem:[#allocation8 + $0x70] sm:$0xf]
    %v519 = vld [vmem:[#allocation8 + $0x74] sm:$0xf]
    %v520 = vld [vmem:[#allocation8 + $0x78] sm:$0xf]
    %v521 = vld [vmem:[#allocation8 + $0x7c] sm:$0xf]
    %v522 = vld [vmem:[%s6] sm:$0x1]
    %v523 = vunpack.c.l.bf16 %v522
    %v524 = vperm.slane %v523, 0
    %v557 = vunpack.c.l.b16 %v490
    %v558 = vunpack.c.l.b16 %v491
    %v559 = vunpack.c.l.b16 %v492
    %v560 = vunpack.c.l.b16 %v493
    %v561 = vunpack.c.l.b16 %v494
    %v562 = vunpack.c.l.b16 %v495
    %v563 = vunpack.c.l.b16 %v496
    %v564 = vunpack.c.l.b16 %v497
    %v565 = vunpack.c.l.b16 %v498
    %v566 = vunpack.c.l.b16 %v499
    %v567 = vunpack.c.l.b16 %v500
    %v568 = vunpack.c.l.b16 %v501
    %v569 = vunpack.c.l.b16 %v502
    %v570 = vunpack.c.l.b16 %v503
    %v571 = vunpack.c.l.b16 %v504
    %v572 = vunpack.c.l.b16 %v505
    %v573 = vunpack.c.l.b16 %v506
    %v574 = vunpack.c.l.b16 %v507
    %v575 = vunpack.c.l.b16 %v508
    %v576 = vunpack.c.l.b16 %v509
    %v577 = vunpack.c.l.b16 %v510
    %v578 = vunpack.c.l.b16 %v511
    %v579 = vunpack.c.l.b16 %v512
    %v580 = vunpack.c.l.b16 %v513
    %v581 = vunpack.c.l.b16 %v514
    %v582 = vunpack.c.l.b16 %v515
    %v583 = vunpack.c.l.b16 %v516
    %v584 = vunpack.c.l.b16 %v517
    %v585 = vunpack.c.l.b16 %v518
    %v586 = vunpack.c.l.b16 %v519
    %v587 = vunpack.c.l.b16 %v520
    %v588 = vunpack.c.l.b16 %v521
    %v589 = vpack.c.b16 %v558, %v557
    %v590 = vpack.c.b16 %v560, %v559
    %v591 = vpack.c.b16 %v562, %v561
    %v592 = vpack.c.b16 %v564, %v563
    %v593 = vpack.c.b16 %v566, %v565
    %v594 = vpack.c.b16 %v568, %v567
    %v595 = vpack.c.b16 %v570, %v569
    %v596 = vpack.c.b16 %v572, %v571
    %v597 = vpack.c.b16 %v574, %v573
    %v598 = vpack.c.b16 %v576, %v575
    %v599 = vpack.c.b16 %v578, %v577
    %v600 = vpack.c.b16 %v580, %v579
    %v601 = vpack.c.b16 %v582, %v581
    %v602 = vpack.c.b16 %v584, %v583
    %v603 = vpack.c.b16 %v586, %v585
    %v604 = vpack.c.b16 %v588, %v587
    %621 = vmatpush.bf16.msra.mxu0 %v596
    %622 = vmatpush.bf16.msra.mxu0 %v595
    %623 = vmatpush.bf16.msra.mxu0 %v594
    %624 = vmatpush.bf16.msra.mxu0 %v593
    %625 = vmatpush.bf16.msra.mxu0 %v592
    %626 = vmatpush.bf16.msra.mxu0 %v591
    %627 = vmatpush.bf16.msra.mxu0 %v590
    %628 = vmatpush.bf16.msra.mxu0 %v589
    %629 = vmatmul.bf16.gmra.mxu0 %v474
    %v630 = vpop.f32.mrf.mxu0
    %v631 = vadd.f32 %v524, %v630
    %v632 = vpop.f32.mrf.mxu0
    %v633 = vadd.f32 %v524, %v632
    %634 = vmatmul.bf16.gmra.mxu0 %v475
    %v635 = vpop.f32.mrf.mxu0
    %v636 = vadd.f32 %v524, %v635
    %v637 = vpop.f32.mrf.mxu0
    %v638 = vadd.f32 %v524, %v637
    %639 = vmatmul.bf16.gmra.mxu0 %v476
    %v640 = vpop.f32.mrf.mxu0
    %v641 = vadd.f32 %v524, %v640
    %v642 = vpop.f32.mrf.mxu0
    %v643 = vadd.f32 %v524, %v642
    %644 = vmatmul.bf16.gmra.mxu0 %v477
    %v645 = vpop.f32.mrf.mxu0
    %v646 = vadd.f32 %v524, %v645
    %v647 = vpop.f32.mrf.mxu0
    %v648 = vadd.f32 %v524, %v647
    %649 = vmatmul.bf16.gmra.mxu0 %v478
    %v650 = vpop.f32.mrf.mxu0
    %v651 = vadd.f32 %v524, %v650
    %v652 = vpop.f32.mrf.mxu0
    %v653 = vadd.f32 %v524, %v652
    %654 = vmatmul.bf16.gmra.mxu0 %v479
    %v655 = vpop.f32.mrf.mxu0
    %v656 = vadd.f32 %v524, %v655
    %v657 = vpop.f32.mrf.mxu0
    %v658 = vadd.f32 %v524, %v657
    %659 = vmatmul.bf16.gmra.mxu0 %v480
    %v660 = vpop.f32.mrf.mxu0
    %v661 = vadd.f32 %v524, %v660
    %v662 = vpop.f32.mrf.mxu0
    %v663 = vadd.f32 %v524, %v662
    %664 = vmatmul.bf16.gmra.mxu0 %v481
    %v665 = vpop.f32.mrf.mxu0
    %v666 = vadd.f32 %v524, %v665
    %v667 = vpop.f32.mrf.mxu0
    %v668 = vadd.f32 %v524, %v667
    %669 = vdwg.mxu0
    %670 = vmatpush.bf16.msra.mxu0 %v604
    %671 = vmatpush.bf16.msra.mxu0 %v603
    %672 = vmatpush.bf16.msra.mxu0 %v602
    %673 = vmatpush.bf16.msra.mxu0 %v601
    %674 = vmatpush.bf16.msra.mxu0 %v600
    %675 = vmatpush.bf16.msra.mxu0 %v599
    %676 = vmatpush.bf16.msra.mxu0 %v598
    %677 = vmatpush.bf16.msra.mxu0 %v597
    %678 = vmatmul.bf16.gmra.mxu0 %v157
    %v679 = vpop.f32.mrf.mxu0
    %v680 = vadd.f32 %v631, %v679
    %v681 = vpop.f32.mrf.mxu0
    %v682 = vadd.f32 %v633, %v681
    %683 = vmatmul.bf16.gmra.mxu0 %v158
    %v684 = vpop.f32.mrf.mxu0
    %v685 = vadd.f32 %v636, %v684
    %v686 = vpop.f32.mrf.mxu0
    %v687 = vadd.f32 %v638, %v686
    %688 = vmatmul.bf16.gmra.mxu0 %v159
    %v689 = vpop.f32.mrf.mxu0
    %v690 = vadd.f32 %v641, %v689
    %v691 = vpop.f32.mrf.mxu0
    %v692 = vadd.f32 %v643, %v691
    %693 = vmatmul.bf16.gmra.mxu0 %v160
    %v694 = vpop.f32.mrf.mxu0
    %v695 = vadd.f32 %v646, %v694
    %v696 = vpop.f32.mrf.mxu0
    %v697 = vadd.f32 %v648, %v696
    %698 = vmatmul.bf16.gmra.mxu0 %v161
    %v699 = vpop.f32.mrf.mxu0
    %v700 = vadd.f32 %v651, %v699
    %v701 = vpop.f32.mrf.mxu0
    %v702 = vadd.f32 %v653, %v701
    %703 = vmatmul.bf16.gmra.mxu0 %v162
    %v704 = vpop.f32.mrf.mxu0
    %v705 = vadd.f32 %v656, %v704
    %v706 = vpop.f32.mrf.mxu0
    %v707 = vadd.f32 %v658, %v706
    %708 = vmatmul.bf16.gmra.mxu0 %v163
    %v709 = vpop.f32.mrf.mxu0
    %v710 = vadd.f32 %v661, %v709
    %v711 = vpop.f32.mrf.mxu0
    %v712 = vadd.f32 %v663, %v711
    %713 = vmatmul.bf16.gmra.mxu0 %v164
    %v714 = vpop.f32.mrf.mxu0
    %v715 = vadd.f32 %v666, %v714
    %v716 = vpop.f32.mrf.mxu0
    %v717 = vadd.f32 %v668, %v716
    %718 = vdwg.mxu0
    %v719 = vsub.f32 0.0, %v680
    %v720 = vsub.f32 0.0, %v682
    %v721 = vsub.f32 0.0, %v685
    %v722 = vsub.f32 0.0, %v687
    %v723 = vsub.f32 0.0, %v690
    %v724 = vsub.f32 0.0, %v692
    %v725 = vsub.f32 0.0, %v695
    %v726 = vsub.f32 0.0, %v697
    %v727 = vsub.f32 0.0, %v700
    %v728 = vsub.f32 0.0, %v702
    %v729 = vsub.f32 0.0, %v705
    %v730 = vsub.f32 0.0, %v707
    %v731 = vsub.f32 0.0, %v710
    %v732 = vsub.f32 0.0, %v712
    %v733 = vsub.f32 0.0, %v715
    %v734 = vsub.f32 0.0, %v717
    %v735 = vmul.f32 %v719, 1.442695
    %v736 = vpow.pop %v735
    %v737 = vmul.f32 %v720, 1.442695
    %v738 = vpow.pop %v737
    %v739 = vmul.f32 %v721, 1.442695
    %v740 = vpow.pop %v739
    %v741 = vmul.f32 %v722, 1.442695
    %v742 = vpow.pop %v741
    %v743 = vmul.f32 %v723, 1.442695
    %v744 = vpow.pop %v743
    %v745 = vmul.f32 %v724, 1.442695
    %v746 = vpow.pop %v745
    %v747 = vmul.f32 %v725, 1.442695
    %v748 = vpow.pop %v747
    %v749 = vmul.f32 %v726, 1.442695
    %v750 = vpow.pop %v749
    %v751 = vmul.f32 %v727, 1.442695
    %v752 = vpow.pop %v751
    %v753 = vmul.f32 %v728, 1.442695
    %v754 = vpow.pop %v753
    %v755 = vmul.f32 %v729, 1.442695
    %v756 = vpow.pop %v755
    %v757 = vmul.f32 %v730, 1.442695
    %v758 = vpow.pop %v757
    %v759 = vmul.f32 %v731, 1.442695
    %v760 = vpow.pop %v759
    %v761 = vmul.f32 %v732, 1.442695
    %v762 = vpow.pop %v761
    %v763 = vmul.f32 %v733, 1.442695
    %v764 = vpow.pop %v763
    %v765 = vmul.f32 %v734, 1.442695
    %v766 = vpow.pop %v765
    %v767 = vadd.f32 %v736, 1.0
    %v768 = vadd.f32 %v738, 1.0
    %v769 = vadd.f32 %v740, 1.0
    %v770 = vadd.f32 %v742, 1.0
    %v771 = vadd.f32 %v744, 1.0
    %v772 = vadd.f32 %v746, 1.0
    %v773 = vadd.f32 %v748, 1.0
    %v774 = vadd.f32 %v750, 1.0
    %v775 = vadd.f32 %v752, 1.0
    %v776 = vadd.f32 %v754, 1.0
    %v777 = vadd.f32 %v756, 1.0
    %v778 = vadd.f32 %v758, 1.0
    %v779 = vadd.f32 %v760, 1.0
    %v780 = vadd.f32 %v762, 1.0
    %v781 = vadd.f32 %v764, 1.0
    %v782 = vadd.f32 %v766, 1.0
    %v783 = vrcp.pop %v767
    %v784 = vrcp.pop %v768
    %v785 = vrcp.pop %v769
    %v786 = vrcp.pop %v770
    %v787 = vrcp.pop %v771
    %v788 = vrcp.pop %v772
    %v789 = vrcp.pop %v773
    %v790 = vrcp.pop %v774
    %v791 = vrcp.pop %v775
    %v792 = vrcp.pop %v776
    %v793 = vrcp.pop %v777
    %v794 = vrcp.pop %v778
    %v795 = vrcp.pop %v779
    %v796 = vrcp.pop %v780
    %v797 = vrcp.pop %v781
    %v798 = vrcp.pop %v782
    %799 = vst [vmem:[#allocation10] sm:$0xff] %v783
    %800 = vst [vmem:[#allocation10 + $0x8] sm:$0xff] %v784
    %801 = vst [vmem:[#allocation10 + $0x10] sm:$0xff] %v785
    %802 = vst [vmem:[#allocation10 + $0x18] sm:$0xff] %v786
    %803 = vst [vmem:[#allocation10 + $0x20] sm:$0xff] %v787
    %804 = vst [vmem:[#allocation10 + $0x28] sm:$0xff] %v788
    %805 = vst [vmem:[#allocation10 + $0x30] sm:$0xff] %v789
    %806 = vst [vmem:[#allocation10 + $0x38] sm:$0xff] %v790
    %807 = vst [vmem:[#allocation10 + $0x40] sm:$0xff] %v791
    %808 = vst [vmem:[#allocation10 + $0x48] sm:$0xff] %v792
    %809 = vst [vmem:[#allocation10 + $0x50] sm:$0xff] %v793
    %810 = vst [vmem:[#allocation10 + $0x58] sm:$0xff] %v794
    %811 = vst [vmem:[#allocation10 + $0x60] sm:$0xff] %v795
    %812 = vst [vmem:[#allocation10 + $0x68] sm:$0xff] %v796
    %813 = vst [vmem:[#allocation10 + $0x70] sm:$0xff] %v797
    %814 = vst [vmem:[#allocation10 + $0x78] sm:$0xff] %v798
    // Predicated region
    $region46: #{tpu_custom_call.1} parent=1 // pred_check
      _
    $region47: #{tpu_custom_call.1} parent=1 // pred_check_branch
      %816 = sbr.rel (0) target = $region49
    $region48: #{tpu_custom_call.1} parent=1 // pred_region
      %818 = vsyncadd [#allocation4], 0
      %s819 = sshll.u32 [#allocation10], 4
      %s820 = int_to_ptr.vmem [resolvable:$true] %s819
      %s821 = sshll.u32 %s7, 4
      %s822 = int_to_ptr.hbm [resolvable:$true] %s821
      %827 = dma.vmem_to_hbm [thread:$0]  %s820, 2048, %s822, [#allocation4], 128, 128, 8
    $region49: #{tpu_custom_call.1} parent=1 // pred_fallthru
      _
    // Predicated region
    $region50: #{tpu_custom_call.1} parent=1 // pred_check
      _
    $region51: #{tpu_custom_call.1} parent=1 // pred_check_branch
      %829 = sbr.rel (0) target = $region53
    $region52: #{tpu_custom_call.1} parent=1 // pred_region
      %831 = dma.done [#allocation4], 2048
    $region53: #{tpu_custom_call.1} parent=1 // pred_fallthru
      _
    %832 = vsyncpa [#allocation3], 1
    %833 = vsyncpa [#allocation6], 1
    %834 = vsyncpa [#allocation9], 1
    %835 = vsyncpa [#allocation4], 1

</llo_original>
